<compile_context>
chip_gen: v6e
topology: v6e:2x2x1
jax: 0.10.0
libtpu: 0.0.40
codegen_flags: <defaults>
</compile_context>

<pallas_src>
import functools
import math

import numpy as np

import jax
import jax.numpy as jnp
from jax import lax
from jax.experimental import pallas as pl
from jax.experimental.pallas import tpu as pltpu


# ----------------------------------------------------------------------------- helpers


def _vmem_limit_bytes():
    """Per-generation VMEM budget: ~3/4 of physical VMEM, capped at 100 MiB."""
    cap = None
    try:
        info = pltpu.get_tpu_info()
        cap = getattr(info, "vmem_capacity_bytes", None)
    except Exception:
        cap = None
    if not cap:
        cap = 64 * 1024 * 1024  # conservative (v7x-sized) fallback
    return int(min(cap * 3 // 4, 100 * 1024 * 1024))


def _compiler_params(dimension_semantics, vmem_limit):
    return pltpu.CompilerParams(
        dimension_semantics=dimension_semantics,
        vmem_limit_bytes=vmem_limit,
    )


def _build_band_matrix(tile_l, kernel_size, dtype):
    """(TL, TL + 2*pad) band so that band @ window == moving_avg rows of the tile."""
    pad = (kernel_size - 1) // 2
    w = tile_l + 2 * pad
    a = np.zeros((tile_l, w), dtype=np.float32)
    for i in range(tile_l):
        a[i, i:i + kernel_size] = 1.0 / kernel_size
    return jnp.asarray(a, dtype=dtype)


def _pad_replicate(x, pad):
    front = jnp.repeat(x[:, :1, :], pad, axis=1)
    end = jnp.repeat(x[:, -1:, :], pad, axis=1)
    return jnp.concatenate([front, x, end], axis=1)


# ----------------------------------------------------------------------------- kernels


def _attn_single_kernel(xq_ref, xk_ref, wqkv_ref, wo_ref, o_ref, *, scale, d_model):
    """tile_k == L: exact single-pass softmax (no online-rescale overhead)."""
    xq = xq_ref[0]                                               # (TQ, D) bf16
    xk = xk_ref[0]                                               # (L,  D) bf16
    q = jnp.dot(xq, wqkv_ref[:, :d_model],
                preferred_element_type=jnp.float32).astype(xq.dtype)
    kv = jnp.dot(xk, wqkv_ref[:, d_model:],
                 preferred_element_type=jnp.float32)             # (L, 2D) f32
    k = kv[:, :d_model].astype(xq.dtype)
    v = kv[:, d_model:].astype(xq.dtype)

    s = lax.dot_general(q, k, (((1,), (1,)), ((), ())),
                        preferred_element_type=jnp.float32) * scale
    m = jnp.max(s, axis=-1, keepdims=True)
    p = jnp.exp(s - m)
    l = jnp.sum(p, axis=-1, keepdims=True)
    ctx = jnp.dot(p.astype(xq.dtype), v, preferred_element_type=jnp.float32)
    ctx = ctx * pl.reciprocal(l, approx=False)
    proj = jnp.dot(ctx.astype(wo_ref.dtype), wo_ref[...],
                   preferred_element_type=jnp.float32)
    o_ref[0] = (xq.astype(jnp.float32) + proj).astype(o_ref.dtype)


def _attn_flash_kernel(xq_ref, xk_ref, wqkv_ref, wo_ref, o_ref,
                       q_sc, m_sc, l_sc, acc_sc, *, scale, d_model):
    """L > tile_k: flash-style online softmax with fused Q/K/V projection."""
    ki = pl.program_id(2)

    @pl.when(ki == 0)
    def _init():
        q = jnp.dot(xq_ref[0], wqkv_ref[:, :d_model],
                    preferred_element_type=jnp.float32)
        q_sc[...] = q.astype(q_sc.dtype)
        m_sc[...] = jnp.full_like(m_sc, -jnp.inf)
        l_sc[...] = jnp.zeros_like(l_sc)
        acc_sc[...] = jnp.zeros_like(acc_sc)

    xk = xk_ref[0]                                               # (TK, D) bf16
    kv = jnp.dot(xk, wqkv_ref[:, d_model:],
                 preferred_element_type=jnp.float32)             # (TK, 2D)
    k = kv[:, :d_model].astype(xk.dtype)
    v = kv[:, d_model:].astype(xk.dtype)

    s = lax.dot_general(q_sc[...], k, (((1,), (1,)), ((), ())),
                        preferred_element_type=jnp.float32) * scale
    m_prev = m_sc[...]
    m_new = jnp.maximum(m_prev, jnp.max(s, axis=-1, keepdims=True))
    alpha = jnp.exp(m_prev - m_new)
    p = jnp.exp(s - m_new)
    l_sc[...] = alpha * l_sc[...] + jnp.sum(p, axis=-1, keepdims=True)
    acc_sc[...] = alpha * acc_sc[...] + jnp.dot(
        p.astype(xk.dtype), v, preferred_element_type=jnp.float32)
    m_sc[...] = m_new

    @pl.when(ki == pl.num_programs(2) - 1)
    def _finalize():
        ctx = acc_sc[...] * pl.reciprocal(l_sc[...], approx=False)
        proj = jnp.dot(ctx.astype(wo_ref.dtype), wo_ref[...],
                       preferred_element_type=jnp.float32)
        o_ref[0] = (xq_ref[0].astype(jnp.float32) + proj).astype(o_ref.dtype)


def _decomp1_ffn_kernel(spad_ref, band_ref, w1_ref, w2_ref, z_ref,
                        win_ref, dma_sem, *, pad, tile_l):
    """series_decomp1 (banded MA) + conv1/ReLU/conv2 + residual."""
    b = pl.program_id(0)
    j = pl.program_id(1)
    w = win_ref.shape[0]                         # tile_l + 2*pad
    start = pl.multiple_of(j * tile_l, tile_l)   # window start in padded coords
    cp = pltpu.make_async_copy(spad_ref.at[b, pl.ds(start, w), :], win_ref, dma_sem)
    cp.start()
    cp.wait()

    win = win_ref[...]                                           # (W, D) bf16
    ma = jnp.dot(band_ref[...], win, preferred_element_type=jnp.float32)
    x1 = win[pad:pad + tile_l].astype(jnp.float32) - ma          # f32 subtraction
    h = jnp.maximum(
        jnp.dot(x1.astype(w1_ref.dtype), w1_ref[...],
                preferred_element_type=jnp.float32), 0.0)
    y = jnp.dot(h.astype(w2_ref.dtype), w2_ref[...],
                preferred_element_type=jnp.float32)
    z_ref[0] = (x1 + y).astype(z_ref.dtype)


def _decomp2_kernel(zpad_ref, band_ref, o_ref, win_ref, dma_sem, *, pad, tile_l):
    """series_decomp2 (banded MA) producing the layer output."""
    b = pl.program_id(0)
    j = pl.program_id(1)
    w = win_ref.shape[0]
    start = pl.multiple_of(j * tile_l, tile_l)
    cp = pltpu.make_async_copy(zpad_ref.at[b, pl.ds(start, w), :], win_ref, dma_sem)
    cp.start()
    cp.wait()

    win = win_ref[...]
    ma = jnp.dot(band_ref[...], win, preferred_element_type=jnp.float32)
    res = win[pad:pad + tile_l].astype(jnp.float32) - ma
    o_ref[0] = res.astype(o_ref.dtype)


# ----------------------------------------------------------------------------- wrapper


def autoformer_encoder_layer(x, wq, wk, wv, wo, w1, w2, *,
                             moving_avg_kernel=25,
                             tile_q=128, tile_k=None, tile_l=128,
                             compute_dtype=jnp.bfloat16):
    B, L, D = x.shape
    d_ff = w1.shape[1]
    assert moving_avg_kernel % 2 == 1, "Autoformer uses an odd moving-average kernel"

    tile_q = min(tile_q, L)
    tile_l = min(tile_l, L)
    if tile_k is None:
        tile_k = L if L <= 512 else 512
    tile_k = min(tile_k, L)
    assert L % tile_q == 0 and L % tile_k == 0 and L % tile_l == 0

    vmem_limit = _vmem_limit_bytes()
    out_dtype = x.dtype
    scale = 1.0 / math.sqrt(D)

    # bf16 operands / intermediates everywhere; f32 accumulation in-kernel.
    xb = x.astype(compute_dtype)
    wqkv = jnp.concatenate([wq, wk, wv], axis=1).astype(compute_dtype)   # (D, 3D)
    wo_c = wo.astype(compute_dtype)
    w1_c = w1.astype(compute_dtype)
    w2_c = w2.astype(compute_dtype)

    # ---- 1) fused QKV projection + attention + Wo + residual -> s -------------------
    if tile_k >= L:
        s = pl.pallas_call(
            functools.partial(_attn_single_kernel, scale=scale, d_model=D),
            grid=(B, L // tile_q),
            in_specs=[
                pl.BlockSpec((1, tile_q, D), lambda b, qi: (b, qi, 0)),   # x: q-tile + residual
                pl.BlockSpec((1, L, D), lambda b, qi: (b, 0, 0)),         # x: K/V source (resident)
                pl.BlockSpec((D, 3 * D), lambda b, qi: (0, 0)),           # Wq|Wk|Wv (resident)
                pl.BlockSpec((D, D), lambda b, qi: (0, 0)),               # Wo (resident)
            ],
            out_specs=pl.BlockSpec((1, tile_q, D), lambda b, qi: (b, qi, 0)),
            out_shape=jax.ShapeDtypeStruct((B, L, D), compute_dtype),
            compiler_params=_compiler_params(("parallel", "parallel"), vmem_limit),
        )(xb, xb, wqkv, wo_c)
    else:
        s = pl.pallas_call(
            functools.partial(_attn_flash_kernel, scale=scale, d_model=D),
            grid=(B, L // tile_q, L // tile_k),
            in_specs=[
                pl.BlockSpec((1, tile_q, D), lambda b, qi, ki: (b, qi, 0)),
                pl.BlockSpec((1, tile_k, D), lambda b, qi, ki: (b, ki, 0)),
                pl.BlockSpec((D, 3 * D), lambda b, qi, ki: (0, 0)),
                pl.BlockSpec((D, D), lambda b, qi, ki: (0, 0)),
            ],
            out_specs=pl.BlockSpec((1, tile_q, D), lambda b, qi, ki: (b, qi, 0)),
            out_shape=jax.ShapeDtypeStruct((B, L, D), compute_dtype),
            scratch_shapes=[
                pltpu.VMEM((tile_q, D), compute_dtype),     # q tile (bf16 operand)
                pltpu.VMEM((tile_q, 1), jnp.float32),       # running max
                pltpu.VMEM((tile_q, 1), jnp.float32),       # running denom
                pltpu.VMEM((tile_q, D), jnp.float32),       # running accumulator
            ],
            compiler_params=_compiler_params(
                ("parallel", "parallel", "arbitrary"), vmem_limit),
        )(xb, xb, wqkv, wo_c)

    pad = (moving_avg_kernel - 1) // 2
    win_rows = tile_l + 2 * pad
    band = _build_band_matrix(tile_l, moving_avg_kernel, compute_dtype)

    # ---- 2) decomp1 (band-limited moving average) + FFN + residual -> z -------------
    s_pad = _pad_replicate(s, pad)                              # (B, L+2p, D) bf16
    z = pl.pallas_call(
        functools.partial(_decomp1_ffn_kernel, pad=pad, tile_l=tile_l),
        grid=(B, L // tile_l),
        in_specs=[
            pl.BlockSpec(memory_space=pl.ANY),                  # padded s; manual window DMA
            pl.BlockSpec((tile_l, win_rows), lambda b, j: (0, 0)),  # band matrix (resident)
            pl.BlockSpec((D, d_ff), lambda b, j: (0, 0)),           # W1 (resident)
            pl.BlockSpec((d_ff, D), lambda b, j: (0, 0)),           # W2 (resident)
        ],
        out_specs=pl.BlockSpec((1, tile_l, D), lambda b, j: (b, j, 0)),
        out_shape=jax.ShapeDtypeStruct((B, L, D), compute_dtype),
        scratch_shapes=[
            pltpu.VMEM((win_rows, D), compute_dtype),
            pltpu.SemaphoreType.DMA(()),
        ],
        compiler_params=_compiler_params(("parallel", "parallel"), vmem_limit),
    )(s_pad, band, w1_c, w2_c)

    # ---- 3) decomp2 (band-limited moving average) -> layer output -------------------
    z_pad = _pad_replicate(z, pad)
    res = pl.pallas_call(
        functools.partial(_decomp2_kernel, pad=pad, tile_l=tile_l),
        grid=(B, L // tile_l),
        in_specs=[
            pl.BlockSpec(memory_space=pl.ANY),                  # padded z; manual window DMA
            pl.BlockSpec((tile_l, win_rows), lambda b, j: (0, 0)),
        ],
        out_specs=pl.BlockSpec((1, tile_l, D), lambda b, j: (b, j, 0)),
        out_shape=jax.ShapeDtypeStruct((B, L, D), out_dtype),
        scratch_shapes=[
            pltpu.VMEM((win_rows, D), compute_dtype),
            pltpu.SemaphoreType.DMA(()),
        ],
        compiler_params=_compiler_params(("parallel", "parallel"), vmem_limit),
    )(z_pad, band)

    return res


# ----------------------------------------------------------------------------- reference


def _moving_avg_ref(x, kernel_size):
    pad = (kernel_size - 1) // 2
    xp = _pad_replicate(x, pad)
    L = x.shape[1]
    acc = jnp.zeros_like(x)
    for d in range(kernel_size):
        acc = acc + xp[:, d:d + L, :]
    return acc / kernel_size


def reference_forward(x, wq, wk, wv, wo, w1, w2, moving_avg_kernel):
    D = x.shape[-1]
    q = x @ wq
    k = x @ wk
    v = x @ wv
    scores = jnp.einsum("bqd,bkd->bqk", q, k) / math.sqrt(D)
    p = jax.nn.softmax(scores, axis=-1)
    ctx = jnp.einsum("bqk,bkd->bqd", p, v)
    s = x + ctx @ wo
    x1 = s - _moving_avg_ref(s, moving_avg_kernel)
    h = jnp.maximum(x1 @ w1, 0.0)
    y = h @ w2
    z = x1 + y
    return z - _moving_avg_ref(z, moving_avg_kernel)


# ----------------------------------------------------------------------------- main


def _run_case(*, B, L, D, d_ff, tile_q, tile_k, tile_l, ma_kernel, seed):
    key = jax.random.PRNGKey(seed)
    kx, kq, kk, kv_, ko, k1, k2 = jax.random.split(key, 7)
    sd = 1.0 / math.sqrt(D)
    x = jax.random.normal(kx, (B, L, D), dtype=jnp.float32)
    wq = jax.random.normal(kq, (D, D), jnp.float32) * sd
    wk = jax.random.normal(kk, (D, D), jnp.float32) * sd
    wv = jax.random.normal(kv_, (D, D), jnp.float32) * sd
    wo = jax.random.normal(ko, (D, D), jnp.float32) * sd
    w1 = jax.random.normal(k1, (D, d_ff), jnp.float32) * sd
    w2 = jax.random.normal(k2, (d_ff, D), jnp.float32) * (1.0 / math.sqrt(d_ff))

    out = autoformer_encoder_layer(
        x, wq, wk, wv, wo, w1, w2,
        moving_avg_kernel=ma_kernel, tile_q=tile_q, tile_k=tile_k, tile_l=tile_l)
    out = jax.block_until_ready(out)

    with jax.default_matmul_precision("highest"):
        ref = reference_forward(x, wq, wk, wv, wo, w1, w2, ma_kernel)
    ref = jax.block_until_ready(ref)

    out_f = np.asarray(out, dtype=np.float32)
    ref_f = np.asarray(ref, dtype=np.float32)
    # bf16 matmul operands + bf16 stored intermediates -> bf16-level tolerances.
    np.testing.assert_allclose(out_f, ref_f, rtol=5e-2, atol=1e-1)
    rel = np.linalg.norm(out_f - ref_f) / np.linalg.norm(ref_f)
    assert rel < 2e-2, f"normwise relative error too large: {rel}"


if __name__ == "__main__":
    # Case 1: tile_k == L -> single-pass exact-softmax attention path.
    _run_case(B=2, L=128, D=128, d_ff=512, tile_q=128, tile_k=128, tile_l=128,
              ma_kernel=25, seed=0)
    # Case 2: L > tile_k -> flash (online-softmax) attention path.
    _run_case(B=1, L=256, D=128, d_ff=256, tile_q=128, tile_k=128, tile_l=128,
              ma_kernel=25, seed=1)
    print("KERNEL_OK")
</pallas_src>

<mosaic_0001>
module attributes {stable_mosaic.version = 11 : i64} {
  func.func @_attn_single_kernel(%arg0: i32, %arg1: i32, %arg2: memref<1x128x128xbf16, #tpu.memory_space<vmem>>, %arg3: memref<1x128x128xbf16, #tpu.memory_space<vmem>>, %arg4: memref<128x384xbf16, #tpu.memory_space<vmem>>, %arg5: memref<128x128xbf16, #tpu.memory_space<vmem>>, %arg6: memref<1x128x128xbf16, #tpu.memory_space<vmem>>) attributes {dimension_semantics = [#tpu.dimension_semantics<parallel>, #tpu.dimension_semantics<parallel>], iteration_bounds = array<i64: 2, 1>, scalar_prefetch = 0 : i64, scratch_operands = 0 : i64, tpu.core_type = #tpu.core_type<tc>, window_params = [{transform_indices = @transform_0, window_bounds = array<i64: 1, 128, 128>}, {transform_indices = @transform_1, window_bounds = array<i64: 1, 128, 128>}, {pipeline_mode = #tpu.pipeline_mode<synchronous>, transform_indices = @transform_2, window_bounds = array<i64: 128, 384>}, {pipeline_mode = #tpu.pipeline_mode<synchronous>, transform_indices = @transform_3, window_bounds = array<i64: 128, 128>}, {transform_indices = @transform_4, window_bounds = array<i64: 1, 128, 128>}]} {
    %c0 = arith.constant 0 : index
    %c0_0 = arith.constant 0 : index
    %c0_1 = arith.constant 0 : index
    %0 = vector.load %arg2[%c0, %c0_0, %c0_1] : memref<1x128x128xbf16, #tpu.memory_space<vmem>>, vector<1x128x128xbf16>
    %1 = vector.shape_cast %0 : vector<1x128x128xbf16> to vector<128x128xbf16>
    %c0_2 = arith.constant 0 : index
    %c0_3 = arith.constant 0 : index
    %c0_4 = arith.constant 0 : index
    %2 = vector.load %arg3[%c0_2, %c0_3, %c0_4] : memref<1x128x128xbf16, #tpu.memory_space<vmem>>, vector<1x128x128xbf16>
    %3 = vector.shape_cast %2 : vector<1x128x128xbf16> to vector<128x128xbf16>
    %c0_5 = arith.constant 0 : index
    %c0_6 = arith.constant 0 : index
    %4 = vector.load %arg4[%c0_5, %c0_6] : memref<128x384xbf16, #tpu.memory_space<vmem>>, vector<128x128xbf16>
    %cst = arith.constant dense<0.000000e+00> : vector<128x128xf32>
    %5 = tpu.matmul %1, %4, %cst {dimension_numbers = #tpu.dot_dimension_numbers<[1], [0], [0], [1], [0, 0, 1, 1], [], []>} : vector<128x128xbf16>, vector<128x128xbf16>, vector<128x128xf32> -> vector<128x128xf32>
    %6 = arith.truncf %5 : vector<128x128xf32> to vector<128x128xbf16>
    %c0_7 = arith.constant 0 : index
    %c128 = arith.constant 128 : index
    %7 = vector.load %arg4[%c0_7, %c128] : memref<128x384xbf16, #tpu.memory_space<vmem>>, vector<128x256xbf16>
    %cst_8 = arith.constant dense<0.000000e+00> : vector<128x256xf32>
    %8 = tpu.matmul %3, %7, %cst_8 {dimension_numbers = #tpu.dot_dimension_numbers<[1], [0], [0], [1], [0, 0, 1, 1], [], []>} : vector<128x128xbf16>, vector<128x256xbf16>, vector<128x256xf32> -> vector<128x256xf32>
    %9 = vector.extract_strided_slice %8 {offsets = [0, 0], sizes = [128, 128], strides = [1, 1]} : vector<128x256xf32> to vector<128x128xf32>
    %10 = arith.truncf %9 : vector<128x128xf32> to vector<128x128xbf16>
    %11 = vector.extract_strided_slice %8 {offsets = [0, 128], sizes = [128, 128], strides = [1, 1]} : vector<128x256xf32> to vector<128x128xf32>
    %12 = arith.truncf %11 : vector<128x128xf32> to vector<128x128xbf16>
    %cst_9 = arith.constant dense<0.000000e+00> : vector<128x128xf32>
    %13 = tpu.matmul %6, %10, %cst_9 {dimension_numbers = #tpu.dot_dimension_numbers<[1], [1], [0], [0], [0, 0, 1, 0], [], []>} : vector<128x128xbf16>, vector<128x128xbf16>, vector<128x128xf32> -> vector<128x128xf32>
    %cst_10 = arith.constant 0.0883883461 : f32
    %14 = vector.broadcast %cst_10 : f32 to vector<128x128xf32>
    %15 = arith.mulf %13, %14 : vector<128x128xf32>
    %cst_11 = arith.constant dense<0xFF800000> : vector<128xf32>
    %16 = vector.multi_reduction <maximumf>, %15, %cst_11 [1] : vector<128x128xf32> to vector<128xf32>
    %17 = vector.shape_cast %16 : vector<128xf32> to vector<128x1xf32>
    %18 = vector.broadcast %17 : vector<128x1xf32> to vector<128x128xf32>
    %19 = arith.subf %15, %18 : vector<128x128xf32>
    %20 = math.exp %19 : vector<128x128xf32>
    %cst_12 = arith.constant dense<0.000000e+00> : vector<128xf32>
    %21 = vector.multi_reduction <add>, %20, %cst_12 [1] : vector<128x128xf32> to vector<128xf32>
    %22 = vector.shape_cast %21 : vector<128xf32> to vector<128x1xf32>
    %23 = arith.truncf %20 : vector<128x128xf32> to vector<128x128xbf16>
    %cst_13 = arith.constant dense<0.000000e+00> : vector<128x128xf32>
    %24 = tpu.matmul %23, %12, %cst_13 {dimension_numbers = #tpu.dot_dimension_numbers<[1], [0], [0], [1], [0, 0, 1, 1], [], []>} : vector<128x128xbf16>, vector<128x128xbf16>, vector<128x128xf32> -> vector<128x128xf32>
    %25 = tpu.reciprocal %22 : vector<128x1xf32> -> vector<128x1xf32>
    %26 = vector.broadcast %25 : vector<128x1xf32> to vector<128x128xf32>
    %27 = arith.mulf %24, %26 : vector<128x128xf32>
    %28 = arith.truncf %27 : vector<128x128xf32> to vector<128x128xbf16>
    %c0_14 = arith.constant 0 : index
    %c0_15 = arith.constant 0 : index
    %29 = vector.load %arg5[%c0_14, %c0_15] : memref<128x128xbf16, #tpu.memory_space<vmem>>, vector<128x128xbf16>
    %cst_16 = arith.constant dense<0.000000e+00> : vector<128x128xf32>
    %30 = tpu.matmul %28, %29, %cst_16 {dimension_numbers = #tpu.dot_dimension_numbers<[1], [0], [0], [1], [0, 0, 1, 1], [], []>} : vector<128x128xbf16>, vector<128x128xbf16>, vector<128x128xf32> -> vector<128x128xf32>
    %31 = arith.extf %1 : vector<128x128xbf16> to vector<128x128xf32>
    %32 = arith.addf %31, %30 : vector<128x128xf32>
    %33 = arith.truncf %32 : vector<128x128xf32> to vector<128x128xbf16>
    %c0_17 = arith.constant 0 : index
    %c0_18 = arith.constant 0 : index
    %c0_19 = arith.constant 0 : index
    %34 = vector.load %arg6[%c0_17, %c0_18, %c0_19] : memref<1x128x128xbf16, #tpu.memory_space<vmem>>, vector<1x128x128xbf16>
    %35 = vector.shape_cast %34 : vector<1x128x128xbf16> to vector<128x128xbf16>
    %36 = vector.shape_cast %33 : vector<128x128xbf16> to vector<1x128x128xbf16>
    tpu.vector_store %arg6[%c0_17, %c0_18, %c0_19], %36 {strides = array<i32>} : memref<1x128x128xbf16, #tpu.memory_space<vmem>>, vector<1x128x128xbf16>,
    return
  }
  func.func @transform_0(%arg0: i32, %arg1: i32) -> (i32, i32, i32) {
    %c0_i32 = arith.constant 0 : i32
    %c0_i32_0 = arith.constant 0 : i32
    return %arg0, %arg1, %c0_i32 : i32, i32, i32
  }
  func.func @transform_1(%arg0: i32, %arg1: i32) -> (i32, i32, i32) {
    %c0_i32 = arith.constant 0 : i32
    %c0_i32_0 = arith.constant 0 : i32
    %c0_i32_1 = arith.constant 0 : i32
    return %arg0, %c0_i32, %c0_i32_0 : i32, i32, i32
  }
  func.func @transform_2(%arg0: i32, %arg1: i32) -> (i32, i32) {
    %c0_i32 = arith.constant 0 : i32
    %c0_i32_0 = arith.constant 0 : i32
    %c0_i32_1 = arith.constant 0 : i32
    return %c0_i32, %c0_i32_0 : i32, i32
  }
  func.func @transform_3(%arg0: i32, %arg1: i32) -> (i32, i32) {
    %c0_i32 = arith.constant 0 : i32
    %c0_i32_0 = arith.constant 0 : i32
    %c0_i32_1 = arith.constant 0 : i32
    return %c0_i32, %c0_i32_0 : i32, i32
  }
  func.func @transform_4(%arg0: i32, %arg1: i32) -> (i32, i32, i32) {
    %c0_i32 = arith.constant 0 : i32
    %c0_i32_0 = arith.constant 0 : i32
    return %arg0, %arg1, %c0_i32 : i32, i32, i32
  }
}

</mosaic_0001>

<llo_original>
// kernel: tpu_custom_call.1
$region0: #{tpu_custom_call.1}
  #allocation0 [shape = 'u32[]', space=smem, size = 0x4, offset = 0x4, fixed_abs, tag = 'smem constant byte address 0x4 - core index']
  #allocation1 [shape = 'u32[144,128]{1,0:T(1,128)}', space=vmem, size = 0x12000, scoped, tag = 'internal scratch']
  %s0 = inlined_call_operand.hbm [shape: bf16[2,128,128], index: 0, kind: input, shape index: {}]
  %s1 = inlined_call_operand.hbm [shape: bf16[2,128,128], index: 1, kind: input, shape index: {}]
  %s2 = inlined_call_operand.hbm [shape: bf16[128,384], index: 2, kind: input, shape index: {}]
  %s3 = inlined_call_operand.hbm [shape: bf16[128,128], index: 3, kind: input, shape index: {}]
  %s4 = inlined_call_operand.hbm [shape: bf16[2,128,128], index: 4, kind: output, shape index: {}]
  %s5 = sld [smem:[#allocation0]]
  $region65: #{tpu_custom_call.1} parent=0
    _
  %s7 = ssub.s32 1, %s5
  %s8 = scalar_select 0, %s7, %s5
  $region1: #{tpu_custom_call.1} parent=0
    #allocation2 [shape = 'u8[65536]{0}', space=vmem, size = 0x10000, scoped, tag = 'input window, operand 0']
    #allocation3 [shape = 's32[2]{0}', space=sflag, size = 0x8, scoped, tag = 'scoped memory for tpu_custom_call.1']
    #allocation4 [shape = 's32[2]{0}', space=sflag, size = 0x8, scoped, tag = 'scoped memory for tpu_custom_call.1']
    #allocation5 [shape = 'u8[65536]{0}', space=vmem, size = 0x10000, scoped, tag = 'input window, operand 1']
    #allocation6 [shape = 's32[2]{0}', space=sflag, size = 0x8, scoped, tag = 'scoped memory for tpu_custom_call.1']
    #allocation7 [shape = 'u8[98304]{0}', space=vmem, size = 0x18000, scoped, tag = 'input window, operand 2, single buffered']
    #allocation8 [shape = 'u8[32768]{0}', space=vmem, size = 0x8000, scoped, tag = 'input window, operand 3, single buffered']
    #allocation9 [shape = 's32[1]{0}', space=sflag, size = 0x4, scoped, tag = 'scoped memory for tpu_custom_call.1']
    #allocation10 [shape = 'u8[65536]{0}', space=vmem, size = 0x10000, scoped, tag = 'output window, operand 0']
    %9 = vsyncpa [#allocation3], 0
    %s10 = scalar_lea.sflag [#allocation3], 1
    %11 = vsyncpa %s10, 0
    %12 = vsyncpa [#allocation6], 0
    %s13 = scalar_lea.sflag [#allocation6], 1
    %14 = vsyncpa %s13, 0
    %15 = vsyncpa [#allocation9], 0
    %16 = vsyncpa [#allocation4], 0
    %s17 = scalar_lea.sflag [#allocation4], 1
    %18 = vsyncpa %s17, 0
    loop: start=0, step=1, limit=4
    $region2: #{tpu_custom_call.1} parent=1 // loop_pre_header
      _
    $region3: #{tpu_custom_call.1} parent=1 // loop_header
      %s20 = sphi 0, %s24
      %p21 = scmp.ge.s32.totalorder %s20, 4
      %s27 = sphi 0, %s39
      %s28 = sphi 0, %s35
      %s29 = sphi 0, %s27
      %s30 = sphi 0, %s28
      %s31 = sphi 0, %s29
      %s32 = sphi 0, %s30
      %s44 = sphi 0, %s46
      %s47 = sphi 0, %s44
      %s48 = sphi 0, %s47
      %s64 = sphi 0, %s48
      %s70 = sphi 0, %s72
      %s73 = sphi 0, %s70
      %s74 = sphi 0, %s73
      %s90 = sphi 0, %s74
      %s94 = sphi 0, %s94
      %s96 = sphi 0, %s94
      %s97 = sphi 0, %s96
      %s111 = sphi 0, %s97
      %s115 = sphi 0, %s115
      %s117 = sphi 0, %s115
      %s118 = sphi 0, %s117
      %s132 = sphi 0, %s118
      %s140 = sphi 0, %s142
      %s143 = sphi 0, %s140
      %s144 = sphi 0, %s143
      %s160 = sphi 0, %s144
    $region4: #{tpu_custom_call.1} parent=1 // loop_header_branch
      %23 = sbr.rel (%p21) target = $region8
    $region5: #{tpu_custom_call.1} parent=1 // loop_body
      %s25 = ssub.s32 %s20, 1
      %s26 = ssub.s32 %s20, 2
      %s33 = sadd.s32 1, %s28
      %p34 = scmp.ge.s32.totalorder %s33, 1
      %s35 = scalar_select %p34, 0, %s33
      %s36 = sadd.s32 1, %s27
      %s37 = scalar_select %p34, %s36, %s27
      %p38 = scmp.ge.s32.totalorder %s37, 2
      %s39 = scalar_select %p38, 0, %s37
      %s40 = ssub.s32 %s27, %s39
      %s41 = ssub.s32 %s28, %s35
      %s42 = sor.u32 %s40, %s41
      %p43 = scmp.eq.s32.totalorder %s42, 0
      %s45 = sadd.s32 %s44, 1
      %s46 = scalar_select %p43, %s44, %s45
      %p49 = pneg %p43
      %p50 = scmp.eq.s32.totalorder %s20, 1
      %p51 = por %p49, %p50
      %p52 = scmp.ne.s32.totalorder %s44, %s47
      %p53 = scmp.eq.s32.totalorder %s20, 0
      %p54 = por %p52, %p53
      %p55 = scmp.ne.s32.totalorder %s44, %s47
      %p56 = scmp.eq.s32.totalorder %s25, 1
      %p57 = por %p55, %p56
      %p58 = scmp.ne.s32.totalorder %s47, %s48
      %p59 = scmp.eq.s32.totalorder %s25, 0
      %p60 = por %p58, %p59
      %p61 = scmp.ne.s32.totalorder %s47, %s48
      %p62 = scmp.eq.s32.totalorder %s26, 1
      %p63 = por %p61, %p62
      %p65 = scmp.ne.s32.totalorder %s48, %s64
      %p66 = scmp.eq.s32.totalorder %s26, 0
      %p67 = por %p65, %p66
      %s68 = ssub.s32 %s27, %s39
      %p69 = scmp.eq.s32.totalorder %s68, 0
      %s71 = sadd.s32 %s70, 1
      %s72 = scalar_select %p69, %s70, %s71
      %p75 = pneg %p69
      %p76 = scmp.eq.s32.totalorder %s20, 1
      %p77 = por %p75, %p76
      %p78 = scmp.ne.s32.totalorder %s70, %s73
      %p79 = scmp.eq.s32.totalorder %s20, 0
      %p80 = por %p78, %p79
      %p81 = scmp.ne.s32.totalorder %s70, %s73
      %p82 = scmp.eq.s32.totalorder %s25, 1
      %p83 = por %p81, %p82
      %p84 = scmp.ne.s32.totalorder %s73, %s74
      %p85 = scmp.eq.s32.totalorder %s25, 0
      %p86 = por %p84, %p85
      %p87 = scmp.ne.s32.totalorder %s73, %s74
      %p88 = scmp.eq.s32.totalorder %s26, 1
      %p89 = por %p87, %p88
      %p91 = scmp.ne.s32.totalorder %s74, %s90
      %p92 = scmp.eq.s32.totalorder %s26, 0
      %p93 = por %p91, %p92
      %s95 = sadd.s32 %s94, 1
      %p98 = scmp.eq.s32.totalorder %s20, 1
      %p99 = scmp.ne.s32.totalorder %s94, %s96
      %p100 = scmp.eq.s32.totalorder %s20, 0
      %p101 = por %p99, %p100
      %p102 = scmp.ne.s32.totalorder %s94, %s96
      %p103 = scmp.eq.s32.totalorder %s25, 1
      %p104 = por %p102, %p103
      %p105 = scmp.ne.s32.totalorder %s96, %s97
      %p106 = scmp.eq.s32.totalorder %s25, 0
      %p107 = por %p105, %p106
      %p108 = scmp.ne.s32.totalorder %s96, %s97
      %p109 = scmp.eq.s32.totalorder %s26, 1
      %p110 = por %p108, %p109
      %p112 = scmp.ne.s32.totalorder %s97, %s111
      %p113 = scmp.eq.s32.totalorder %s26, 0
      %p114 = por %p112, %p113
      %s116 = sadd.s32 %s115, 1
      %p119 = scmp.eq.s32.totalorder %s20, 1
      %p120 = scmp.ne.s32.totalorder %s115, %s117
      %p121 = scmp.eq.s32.totalorder %s20, 0
      %p122 = por %p120, %p121
      %p123 = scmp.ne.s32.totalorder %s115, %s117
      %p124 = scmp.eq.s32.totalorder %s25, 1
      %p125 = por %p123, %p124
      %p126 = scmp.ne.s32.totalorder %s117, %s118
      %p127 = scmp.eq.s32.totalorder %s25, 0
      %p128 = por %p126, %p127
      %p129 = scmp.ne.s32.totalorder %s117, %s118
      %p130 = scmp.eq.s32.totalorder %s26, 1
      %p131 = por %p129, %p130
      %p133 = scmp.ne.s32.totalorder %s118, %s132
      %p134 = scmp.eq.s32.totalorder %s26, 0
      %p135 = por %p133, %p134
      %s136 = ssub.s32 %s27, %s39
      %s137 = ssub.s32 %s28, %s35
      %s138 = sor.u32 %s136, %s137
      %p139 = scmp.eq.s32.totalorder %s138, 0
      %s141 = sadd.s32 %s140, 1
      %s142 = scalar_select %p139, %s140, %s141
      %p145 = pneg %p139
      %p146 = scmp.eq.s32.totalorder %s20, 1
      %p147 = por %p145, %p146
      %p148 = scmp.ne.s32.totalorder %s140, %s143
      %p149 = scmp.eq.s32.totalorder %s20, 0
      %p150 = por %p148, %p149
      %p151 = scmp.ne.s32.totalorder %s140, %s143
      %p152 = scmp.eq.s32.totalorder %s25, 1
      %p153 = por %p151, %p152
      %p154 = scmp.ne.s32.totalorder %s143, %s144
      %p155 = scmp.eq.s32.totalorder %s25, 0
      %p156 = por %p154, %p155
      %p157 = scmp.ne.s32.totalorder %s143, %s144
      %p158 = scmp.eq.s32.totalorder %s26, 1
      %p159 = por %p157, %p158
      %p161 = scmp.ne.s32.totalorder %s144, %s160
      %p162 = scmp.eq.s32.totalorder %s26, 0
      %p163 = por %p161, %p162
      %p164 = scmp.le.s32.totalorder 1, %s20
      %p165 = scmp.lt.s32.totalorder %s20, 3
      %p166 = pnand %p164, %p165
      %p167 = pneg %p166
      // Predicated region
      $region9: #{tpu_custom_call.1} parent=5 // pred_check
        _
      $region10: #{tpu_custom_call.1} parent=5 // pred_check_branch
        %169 = sbr.rel (%p166) target = $region12
      $region11: #{tpu_custom_call.1} parent=5 // pred_region
        %s170 = ssub.s32 %s20, 1
        // Predicated region
        $region13: #{tpu_custom_call.1} parent=11 // pred_check
          %p171 = pneg %p107
        $region14: #{tpu_custom_call.1} parent=11 // pred_check_branch
          %173 = sbr.rel (%p171) target = $region16
        $region15: #{tpu_custom_call.1} parent=11 // pred_region
          %s175 = ssub.s32 3072, 3072
          %176 = vsyncadd [#allocation6], %s175
          %s177 = sshll.u32 [#allocation7], 4
          %s178 = int_to_ptr.vmem [resolvable:$true] %s177
          %183 = dma.hbm_to_vmem [thread:$0]  %s2, 3072, %s178, [#allocation6], 192, 192, 12
        $region16: #{tpu_custom_call.1} parent=11 // pred_fallthru
          _
        // Predicated region
        $region17: #{tpu_custom_call.1} parent=11 // pred_check
          %p184 = pneg %p128
        $region18: #{tpu_custom_call.1} parent=11 // pred_check_branch
          %186 = sbr.rel (%p184) target = $region20
        $region19: #{tpu_custom_call.1} parent=11 // pred_region
          %s188 = ssub.s32 1024, 1024
          %189 = vsyncadd [#allocation9], %s188
          %s190 = sshll.u32 [#allocation8], 4
          %s191 = int_to_ptr.vmem [resolvable:$true] %s190
          %196 = dma.hbm_to_vmem [thread:$0]  %s3, 1024, %s191, [#allocation9], 64, 64, 4
        $region20: #{tpu_custom_call.1} parent=11 // pred_fallthru
          _
      $region12: #{tpu_custom_call.1} parent=5 // pred_fallthru
        _
      %p197 = scmp.lt.s32.totalorder %s20, 2
      // Predicated region
      $region21: #{tpu_custom_call.1} parent=5 // pred_check
        %p198 = pneg %p197
      $region22: #{tpu_custom_call.1} parent=5 // pred_check_branch
        %200 = sbr.rel (%p198) target = $region24
      $region23: #{tpu_custom_call.1} parent=5 // pred_region
        // Predicated region
        $region25: #{tpu_custom_call.1} parent=23 // pred_check
          %p201 = pneg %p54
        $region26: #{tpu_custom_call.1} parent=23 // pred_check_branch
          %203 = sbr.rel (%p201) target = $region28
        $region27: #{tpu_custom_call.1} parent=23 // pred_region
          %s204 = sand.u32 %s44, 1
          %s205 = scalar_lea.sflag [#allocation3], %s204
          %s206 = sand.u32 %s44, 1
          %s207 = smul.addr %s206, 64
          %s208 = scalar_lea.vmem [#allocation2], %s207
          %s209 = smul.u32 16, %s28
          %s211 = ssub.s32 1024, 1024
          %212 = vsyncadd %s205, %s211
          %s213 = smul.addr %s27, 16
          %s214 = sadd.s32 %s209, %s213
          %s215 = smul.addr %s214, 64
          %s216 = scalar_lea.hbm %s0, %s215
          %s217 = sshll.u32 %s208, 4
          %s218 = int_to_ptr.vmem [resolvable:$true] %s217
          %223 = dma.hbm_to_vmem [thread:$0]  %s216, 1024, %s218, %s205, 64, 64, 4
        $region28: #{tpu_custom_call.1} parent=23 // pred_fallthru
          _
        // Predicated region
        $region29: #{tpu_custom_call.1} parent=23 // pred_check
          %p224 = pneg %p80
        $region30: #{tpu_custom_call.1} parent=23 // pred_check_branch
          %226 = sbr.rel (%p224) target = $region32
        $region31: #{tpu_custom_call.1} parent=23 // pred_region
          %s227 = sand.u32 %s20, 1
          %s228 = scalar_lea.sflag [#allocation6], %s227
          %s229 = sand.u32 %s70, 1
          %s230 = smul.addr %s229, 64
          %s231 = scalar_lea.vmem [#allocation5], %s230
          %s233 = ssub.s32 1024, 1024
          %234 = vsyncadd %s228, %s233
          %s235 = smul.addr %s27, 16
          %s236 = smul.addr %s235, 64
          %s237 = scalar_lea.hbm %s1, %s236
          %s238 = sshll.u32 %s231, 4
          %s239 = int_to_ptr.vmem [resolvable:$true] %s238
          %244 = dma.hbm_to_vmem [thread:$0]  %s237, 1024, %s239, %s228, 64, 64, 4
        $region32: #{tpu_custom_call.1} parent=23 // pred_fallthru
          _
      $region24: #{tpu_custom_call.1} parent=5 // pred_fallthru
        _
      %p245 = scmp.le.s32.totalorder 1, %s20
      %p246 = scmp.lt.s32.totalorder %s20, 3
      %p247 = pnand %p245, %p246
      %p248 = pneg %p247
      // Predicated region
      $region33: #{tpu_custom_call.1} parent=5 // pred_check
        _
      $region34: #{tpu_custom_call.1} parent=5 // pred_check_branch
        %250 = sbr.rel (%p247) target = $region36
      $region35: #{tpu_custom_call.1} parent=5 // pred_region
        %s251 = ssub.s32 %s20, 1
        %s252 = sand.u32 %s47, 1
        %s253 = scalar_lea.sflag [#allocation3], %s252
        %s254 = sand.u32 %s47, 1
        %s255 = smul.addr %s254, 64
        %s256 = scalar_lea.vmem [#allocation2], %s255
        // Predicated region
        $region37: #{tpu_custom_call.1} parent=35 // pred_check
          %p257 = pneg %p60
        $region38: #{tpu_custom_call.1} parent=35 // pred_check_branch
          %259 = sbr.rel (%p257) target = $region40
        $region39: #{tpu_custom_call.1} parent=35 // pred_region
          %260 = dma.done %s253, 1024
        $region40: #{tpu_custom_call.1} parent=35 // pred_fallthru
          _
        %s261 = sand.u32 %s25, 1
        %s262 = scalar_lea.sflag [#allocation6], %s261
        %s263 = sand.u32 %s73, 1
        %s264 = smul.addr %s263, 64
        %s265 = scalar_lea.vmem [#allocation5], %s264
        // Predicated region
        $region41: #{tpu_custom_call.1} parent=35 // pred_check
          %p266 = pneg %p86
        $region42: #{tpu_custom_call.1} parent=35 // pred_check_branch
          %268 = sbr.rel (%p266) target = $region44
        $region43: #{tpu_custom_call.1} parent=35 // pred_region
          %269 = dma.done %s262, 1024
        $region44: #{tpu_custom_call.1} parent=35 // pred_fallthru
          _
        // Predicated region
        $region45: #{tpu_custom_call.1} parent=35 // pred_check
          %p270 = pneg %p107
        $region46: #{tpu_custom_call.1} parent=35 // pred_check_branch
          %272 = sbr.rel (%p270) target = $region48
        $region47: #{tpu_custom_call.1} parent=35 // pred_region
          %273 = dma.done [#allocation6], 3072
        $region48: #{tpu_custom_call.1} parent=35 // pred_fallthru
          _
        // Predicated region
        $region49: #{tpu_custom_call.1} parent=35 // pred_check
          %p274 = pneg %p128
        $region50: #{tpu_custom_call.1} parent=35 // pred_check_branch
          %276 = sbr.rel (%p274) target = $region52
        $region51: #{tpu_custom_call.1} parent=35 // pred_region
          %277 = dma.done [#allocation9], 1024
        $region52: #{tpu_custom_call.1} parent=35 // pred_fallthru
          _
        %s278 = sand.u32 %s47, 1
        %s279 = scalar_lea.sflag [#allocation3], %s278
        %s280 = sand.u32 %s47, 1
        %s281 = smul.addr %s280, 64
        %s282 = scalar_lea.vmem [#allocation2], %s281
        %p283 = pneg %p60
        %p284 = pneg %p57
        %s285 = sand.u32 %s25, 1
        %s286 = scalar_lea.sflag [#allocation6], %s285
        %s287 = sand.u32 %s73, 1
        %s288 = smul.addr %s287, 64
        %s289 = scalar_lea.vmem [#allocation5], %s288
        %p290 = pneg %p86
        %p291 = pneg %p83
        %p292 = pneg %p107
        %p293 = pneg %p104
        %p294 = pneg %p128
        %p295 = pneg %p125
        %p296 = pneg %p156
        %p297 = pneg %p153
        %s298 = sand.u32 %s143, 1
        %s299 = scalar_lea.sflag [#allocation4], %s298
        %s300 = sand.u32 %s143, 1
        %s301 = smul.addr %s300, 64
        %s302 = scalar_lea.vmem [#allocation10], %s301
        %s303 = smul.u32 16, %s30
        %s304 = smul.u32 16, %s30
        %v306 = vld [vmem:[%s256] sm:$0xf]
        %v307 = vld [vmem:[%s256 + $0x4] sm:$0xf]
        %v308 = vld [vmem:[%s256 + $0x8] sm:$0xf]
        %v309 = vld [vmem:[%s256 + $0xc] sm:$0xf]
        %v310 = vld [vmem:[%s256 + $0x10] sm:$0xf]
        %v311 = vld [vmem:[%s256 + $0x14] sm:$0xf]
        %v312 = vld [vmem:[%s256 + $0x18] sm:$0xf]
        %v313 = vld [vmem:[%s256 + $0x1c] sm:$0xf]
        %v314 = vld [vmem:[%s256 + $0x20] sm:$0xf]
        %v315 = vld [vmem:[%s256 + $0x24] sm:$0xf]
        %v316 = vld [vmem:[%s256 + $0x28] sm:$0xf]
        %v317 = vld [vmem:[%s256 + $0x2c] sm:$0xf]
        %v318 = vld [vmem:[%s256 + $0x30] sm:$0xf]
        %v319 = vld [vmem:[%s256 + $0x34] sm:$0xf]
        %v320 = vld [vmem:[%s256 + $0x38] sm:$0xf]
        %v321 = vld [vmem:[%s256 + $0x3c] sm:$0xf]
        %v322 = vld [vmem:[%s265] sm:$0xf]
        %v323 = vld [vmem:[%s265 + $0x4] sm:$0xf]
        %v324 = vld [vmem:[%s265 + $0x8] sm:$0xf]
        %v325 = vld [vmem:[%s265 + $0xc] sm:$0xf]
        %v326 = vld [vmem:[%s265 + $0x10] sm:$0xf]
        %v327 = vld [vmem:[%s265 + $0x14] sm:$0xf]
        %v328 = vld [vmem:[%s265 + $0x18] sm:$0xf]
        %v329 = vld [vmem:[%s265 + $0x1c] sm:$0xf]
        %v330 = vld [vmem:[%s265 + $0x20] sm:$0xf]
        %v331 = vld [vmem:[%s265 + $0x24] sm:$0xf]
        %v332 = vld [vmem:[%s265 + $0x28] sm:$0xf]
        %v333 = vld [vmem:[%s265 + $0x2c] sm:$0xf]
        %v334 = vld [vmem:[%s265 + $0x30] sm:$0xf]
        %v335 = vld [vmem:[%s265 + $0x34] sm:$0xf]
        %v336 = vld [vmem:[%s265 + $0x38] sm:$0xf]
        %v337 = vld [vmem:[%s265 + $0x3c] sm:$0xf]
        %v338 = vld [vmem:[#allocation7] sm:$0xf]
        %v339 = vld [vmem:[#allocation7 + $0xc] sm:$0xf]
        %v340 = vld [vmem:[#allocation7 + $0x18] sm:$0xf]
        %v341 = vld [vmem:[#allocation7 + $0x24] sm:$0xf]
        %v342 = vld [vmem:[#allocation7 + $0x30] sm:$0xf]
        %v343 = vld [vmem:[#allocation7 + $0x3c] sm:$0xf]
        %v344 = vld [vmem:[#allocation7 + $0x48] sm:$0xf]
        %v345 = vld [vmem:[#allocation7 + $0x54] sm:$0xf]
        %v346 = vld [vmem:[#allocation7 + $0x60] sm:$0xf]
        %v347 = vld [vmem:[#allocation7 + $0x6c] sm:$0xf]
        %v348 = vld [vmem:[#allocation7 + $0x78] sm:$0xf]
        %v349 = vld [vmem:[#allocation7 + $0x84] sm:$0xf]
        %v350 = vld [vmem:[#allocation7 + $0x90] sm:$0xf]
        %v351 = vld [vmem:[#allocation7 + $0x9c] sm:$0xf]
        %v352 = vld [vmem:[#allocation7 + $0xa8] sm:$0xf]
        %v353 = vld [vmem:[#allocation7 + $0xb4] sm:$0xf]
        %v370 = vunpack.c.l.b16 %v306
        %v371 = vunpack.c.l.b16 %v307
        %v372 = vunpack.c.l.b16 %v308
        %v373 = vunpack.c.l.b16 %v309
        %v374 = vunpack.c.l.b16 %v310
        %v375 = vunpack.c.l.b16 %v311
        %v376 = vunpack.c.l.b16 %v312
        %v377 = vunpack.c.l.b16 %v313
        %v378 = vunpack.c.l.b16 %v314
        %v379 = vunpack.c.l.b16 %v315
        %v380 = vunpack.c.l.b16 %v316
        %v381 = vunpack.c.l.b16 %v317
        %v382 = vunpack.c.l.b16 %v318
        %v383 = vunpack.c.l.b16 %v319
        %v384 = vunpack.c.l.b16 %v320
        %v385 = vunpack.c.l.b16 %v321
        %v386 = vpack.c.b16 %v371, %v370
        %v387 = vpack.c.b16 %v373, %v372
        %v388 = vpack.c.b16 %v375, %v374
        %v389 = vpack.c.b16 %v377, %v376
        %v390 = vpack.c.b16 %v379, %v378
        %v391 = vpack.c.b16 %v381, %v380
        %v392 = vpack.c.b16 %v383, %v382
        %v393 = vpack.c.b16 %v385, %v384
        %v418 = vunpack.c.l.b16 %v338
        %v419 = vunpack.c.l.b16 %v339
        %v420 = vunpack.c.l.b16 %v340
        %v421 = vunpack.c.l.b16 %v341
        %v422 = vunpack.c.l.b16 %v342
        %v423 = vunpack.c.l.b16 %v343
        %v424 = vunpack.c.l.b16 %v344
        %v425 = vunpack.c.l.b16 %v345
        %v426 = vunpack.c.l.b16 %v346
        %v427 = vunpack.c.l.b16 %v347
        %v428 = vunpack.c.l.b16 %v348
        %v429 = vunpack.c.l.b16 %v349
        %v430 = vunpack.c.l.b16 %v350
        %v431 = vunpack.c.l.b16 %v351
        %v432 = vunpack.c.l.b16 %v352
        %v433 = vunpack.c.l.b16 %v353
        %v434 = vpack.c.b16 %v419, %v418
        %v435 = vpack.c.b16 %v421, %v420
        %v436 = vpack.c.b16 %v423, %v422
        %v437 = vpack.c.b16 %v425, %v424
        %v438 = vpack.c.b16 %v427, %v426
        %v439 = vpack.c.b16 %v429, %v428
        %v440 = vpack.c.b16 %v431, %v430
        %v441 = vpack.c.b16 %v433, %v432
        %450 = vmatprep.subr.bf16.mxu0 0
        %451 = vmatpush1.bf16.msra.mxu0 %v441
        %452 = vmatprep.subr.bf16.mxu0 0
        %453 = vmatpush1.bf16.msra.mxu0 %v440
        %454 = vmatprep.subr.bf16.mxu0 0
        %455 = vmatpush1.bf16.msra.mxu0 %v439
        %456 = vmatprep.subr.bf16.mxu0 0
        %457 = vmatpush1.bf16.msra.mxu0 %v438
        %458 = vmatprep.subr.bf16.mxu0 0
        %459 = vmatpush1.bf16.msra.mxu0 %v437
        %460 = vmatprep.subr.bf16.mxu0 0
        %461 = vmatpush1.bf16.msra.mxu0 %v436
        %462 = vmatprep.subr.bf16.mxu0 0
        %463 = vmatpush1.bf16.msra.mxu0 %v435
        %464 = vmatprep.subr.bf16.mxu0 0
        %465 = vmatpush1.bf16.msra.mxu0 %v434
        %466 = vmatprep.subr.bf16.mxu0 0
        %467 = vmatpush2.bf16.msra.mxu0 0
        %468 = vmatprep.subr.bf16.mxu0 0
        %469 = vmatpush2.bf16.msra.mxu0 0
        %470 = vmatprep.subr.bf16.mxu0 0
        %471 = vmatpush2.bf16.msra.mxu0 0
        %472 = vmatprep.subr.bf16.mxu0 0
        %473 = vmatpush2.bf16.msra.mxu0 0
        %474 = vmatprep.subr.bf16.mxu0 0
        %475 = vmatpush2.bf16.msra.mxu0 0
        %476 = vmatprep.subr.bf16.mxu0 0
        %477 = vmatpush2.bf16.msra.mxu0 0
        %478 = vmatprep.subr.bf16.mxu0 0
        %479 = vmatpush2.bf16.msra.mxu0 0
        %480 = vmatprep.subr.bf16.mxu0 0
        %481 = vmatpush2.bf16.msra.mxu0 0
        %482 = vmatprep.mubr.bf16.mxu0 0
        %483 = vmatmul.mubr.bf16.gmra.mxu0 %v386
        %v484 = vpop.f32.mrf.mxu0
        %v485 = vadd.f32 0.0, %v484
        %v486 = vpop.f32.mrf.mxu0
        %v487 = vpop.f32.mrf.mxu0
        %v488 = vadd.f32 0.0, %v487
        %v489 = vpop.f32.mrf.mxu0
        %490 = vmatprep.mubr.bf16.mxu0 0
        %491 = vmatmul.mubr.bf16.gmra.mxu0 %v387
        %v492 = vpop.f32.mrf.mxu0
        %v493 = vadd.f32 0.0, %v492
        %v494 = vpop.f32.mrf.mxu0
        %v495 = vpop.f32.mrf.mxu0
        %v496 = vadd.f32 0.0, %v495
        %v497 = vpop.f32.mrf.mxu0
        %498 = vmatprep.mubr.bf16.mxu0 0
        %499 = vmatmul.mubr.bf16.gmra.mxu0 %v388
        %v500 = vpop.f32.mrf.mxu0
        %v501 = vadd.f32 0.0, %v500
        %v502 = vpop.f32.mrf.mxu0
        %v503 = vpop.f32.mrf.mxu0
        %v504 = vadd.f32 0.0, %v503
        %v505 = vpop.f32.mrf.mxu0
        %506 = vmatprep.mubr.bf16.mxu0 0
        %507 = vmatmul.mubr.bf16.gmra.mxu0 %v389
        %v508 = vpop.f32.mrf.mxu0
        %v509 = vadd.f32 0.0, %v508
        %v510 = vpop.f32.mrf.mxu0
        %v511 = vpop.f32.mrf.mxu0
        %v512 = vadd.f32 0.0, %v511
        %v513 = vpop.f32.mrf.mxu0
        %514 = vmatprep.mubr.bf16.mxu0 0
        %515 = vmatmul.mubr.bf16.gmra.mxu0 %v390
        %v516 = vpop.f32.mrf.mxu0
        %v517 = vadd.f32 0.0, %v516
        %v518 = vpop.f32.mrf.mxu0
        %v519 = vpop.f32.mrf.mxu0
        %v520 = vadd.f32 0.0, %v519
        %v521 = vpop.f32.mrf.mxu0
        %522 = vmatprep.mubr.bf16.mxu0 0
        %523 = vmatmul.mubr.bf16.gmra.mxu0 %v391
        %v524 = vpop.f32.mrf.mxu0
        %v525 = vadd.f32 0.0, %v524
        %v526 = vpop.f32.mrf.mxu0
        %v527 = vpop.f32.mrf.mxu0
        %v528 = vadd.f32 0.0, %v527
        %v529 = vpop.f32.mrf.mxu0
        %530 = vmatprep.mubr.bf16.mxu0 0
        %531 = vmatmul.mubr.bf16.gmra.mxu0 %v392
        %v532 = vpop.f32.mrf.mxu0
        %v533 = vadd.f32 0.0, %v532
        %v534 = vpop.f32.mrf.mxu0
        %v535 = vpop.f32.mrf.mxu0
        %v536 = vadd.f32 0.0, %v535
        %v537 = vpop.f32.mrf.mxu0
        %538 = vmatprep.mubr.bf16.mxu0 0
        %539 = vmatmul.mubr.bf16.gmra.mxu0 %v393
        %v540 = vpop.f32.mrf.mxu0
        %v541 = vadd.f32 0.0, %v540
        %v542 = vpop.f32.mrf.mxu0
        %v543 = vpop.f32.mrf.mxu0
        %v544 = vadd.f32 0.0, %v543
        %v545 = vpop.f32.mrf.mxu0
        %546 = vdwg.mxu0
        %v547 = vpack.c.bf16 %v488, %v485
        %v548 = vpack.c.bf16 %v496, %v493
        %v549 = vpack.c.bf16 %v504, %v501
        %v550 = vpack.c.bf16 %v512, %v509
        %v551 = vpack.c.bf16 %v520, %v517
        %v552 = vpack.c.bf16 %v528, %v525
        %v553 = vpack.c.bf16 %v536, %v533
        %v554 = vpack.c.bf16 %v544, %v541
        %v555 = vld [vmem:[#allocation7 + $0x4] sm:$0xff]
        %v556 = vld [vmem:[#allocation7 + $0x10] sm:$0xff]
        %v557 = vld [vmem:[#allocation7 + $0x1c] sm:$0xff]
        %v558 = vld [vmem:[#allocation7 + $0x28] sm:$0xff]
        %v559 = vld [vmem:[#allocation7 + $0x34] sm:$0xff]
        %v560 = vld [vmem:[#allocation7 + $0x40] sm:$0xff]
        %v561 = vld [vmem:[#allocation7 + $0x4c] sm:$0xff]
        %v562 = vld [vmem:[#allocation7 + $0x58] sm:$0xff]
        %v563 = vld [vmem:[#allocation7 + $0x64] sm:$0xff]
        %v564 = vld [vmem:[#allocation7 + $0x70] sm:$0xff]
        %v565 = vld [vmem:[#allocation7 + $0x7c] sm:$0xff]
        %v566 = vld [vmem:[#allocation7 + $0x88] sm:$0xff]
        %v567 = vld [vmem:[#allocation7 + $0x94] sm:$0xff]
        %v568 = vld [vmem:[#allocation7 + $0xa0] sm:$0xff]
        %v569 = vld [vmem:[#allocation7 + $0xac] sm:$0xff]
        %v570 = vld [vmem:[#allocation7 + $0xb8] sm:$0xff]
        %v587 = vunpack.c.l.b16 %v322
        %v588 = vunpack.c.l.b16 %v323
        %v589 = vunpack.c.l.b16 %v324
        %v590 = vunpack.c.l.b16 %v325
        %v591 = vunpack.c.l.b16 %v326
        %v592 = vunpack.c.l.b16 %v327
        %v593 = vunpack.c.l.b16 %v328
        %v594 = vunpack.c.l.b16 %v329
        %v595 = vunpack.c.l.b16 %v330
        %v596 = vunpack.c.l.b16 %v331
        %v597 = vunpack.c.l.b16 %v332
        %v598 = vunpack.c.l.b16 %v333
        %v599 = vunpack.c.l.b16 %v334
        %v600 = vunpack.c.l.b16 %v335
        %v601 = vunpack.c.l.b16 %v336
        %v602 = vunpack.c.l.b16 %v337
        %v603 = vpack.c.b16 %v588, %v587
        %v604 = vpack.c.b16 %v590, %v589
        %v605 = vpack.c.b16 %v592, %v591
        %v606 = vpack.c.b16 %v594, %v593
        %v607 = vpack.c.b16 %v596, %v595
        %v608 = vpack.c.b16 %v598, %v597
        %v609 = vpack.c.b16 %v600, %v599
        %v610 = vpack.c.b16 %v602, %v601
        %v635 = vunpack.c.l.b16 %v555
        %v636 = vunpack.c.h.b16 %v555
        %v637 = vunpack.c.l.b16 %v556
        %v638 = vunpack.c.h.b16 %v556
        %v639 = vunpack.c.l.b16 %v557
        %v640 = vunpack.c.h.b16 %v557
        %v641 = vunpack.c.l.b16 %v558
        %v642 = vunpack.c.h.b16 %v558
        %v643 = vunpack.c.l.b16 %v559
        %v644 = vunpack.c.h.b16 %v559
        %v645 = vunpack.c.l.b16 %v560
        %v646 = vunpack.c.h.b16 %v560
        %v647 = vunpack.c.l.b16 %v561
        %v648 = vunpack.c.h.b16 %v561
        %v649 = vunpack.c.l.b16 %v562
        %v650 = vunpack.c.h.b16 %v562
        %v651 = vunpack.c.l.b16 %v563
        %v652 = vunpack.c.h.b16 %v563
        %v653 = vunpack.c.l.b16 %v564
        %v654 = vunpack.c.h.b16 %v564
        %v655 = vunpack.c.l.b16 %v565
        %v656 = vunpack.c.h.b16 %v565
        %v657 = vunpack.c.l.b16 %v566
        %v658 = vunpack.c.h.b16 %v566
        %v659 = vunpack.c.l.b16 %v567
        %v660 = vunpack.c.h.b16 %v567
        %v661 = vunpack.c.l.b16 %v568
        %v662 = vunpack.c.h.b16 %v568
        %v663 = vunpack.c.l.b16 %v569
        %v664 = vunpack.c.h.b16 %v569
        %v665 = vunpack.c.l.b16 %v570
        %v666 = vunpack.c.h.b16 %v570
        %v667 = vpack.c.b16 %v637, %v635
        %v668 = vpack.c.b16 %v638, %v636
        %v669 = vpack.c.b16 %v641, %v639
        %v670 = vpack.c.b16 %v642, %v640
        %v671 = vpack.c.b16 %v645, %v643
        %v672 = vpack.c.b16 %v646, %v644
        %v673 = vpack.c.b16 %v649, %v647
        %v674 = vpack.c.b16 %v650, %v648
        %v675 = vpack.c.b16 %v653, %v651
        %v676 = vpack.c.b16 %v654, %v652
        %v677 = vpack.c.b16 %v657, %v655
        %v678 = vpack.c.b16 %v658, %v656
        %v679 = vpack.c.b16 %v661, %v659
        %v680 = vpack.c.b16 %v662, %v660
        %v681 = vpack.c.b16 %v665, %v663
        %v682 = vpack.c.b16 %v666, %v664
        %699 = vmatprep.subr.bf16.mxu0 %v682
        %700 = vmatpush1.bf16.msra.mxu0 %v681
        %701 = vmatprep.subr.bf16.mxu0 %v680
        %702 = vmatpush1.bf16.msra.mxu0 %v679
        %703 = vmatprep.subr.bf16.mxu0 %v678
        %704 = vmatpush1.bf16.msra.mxu0 %v677
        %705 = vmatprep.subr.bf16.mxu0 %v676
        %706 = vmatpush1.bf16.msra.mxu0 %v675
        %707 = vmatprep.subr.bf16.mxu0 %v674
        %708 = vmatpush1.bf16.msra.mxu0 %v673
        %709 = vmatprep.subr.bf16.mxu0 %v672
        %710 = vmatpush1.bf16.msra.mxu0 %v671
        %711 = vmatprep.subr.bf16.mxu0 %v670
        %712 = vmatpush1.bf16.msra.mxu0 %v669
        %713 = vmatprep.subr.bf16.mxu0 %v668
        %714 = vmatpush1.bf16.msra.mxu0 %v667
        %715 = vmatprep.subr.bf16.mxu0 0
        %716 = vmatpush2.bf16.msra.mxu0 0
        %717 = vmatprep.subr.bf16.mxu0 0
        %718 = vmatpush2.bf16.msra.mxu0 0
        %719 = vmatprep.subr.bf16.mxu0 0
        %720 = vmatpush2.bf16.msra.mxu0 0
        %721 = vmatprep.subr.bf16.mxu0 0
        %722 = vmatpush2.bf16.msra.mxu0 0
        %723 = vmatprep.subr.bf16.mxu0 0
        %724 = vmatpush2.bf16.msra.mxu0 0
        %725 = vmatprep.subr.bf16.mxu0 0
        %726 = vmatpush2.bf16.msra.mxu0 0
        %727 = vmatprep.subr.bf16.mxu0 0
        %728 = vmatpush2.bf16.msra.mxu0 0
        %729 = vmatprep.subr.bf16.mxu0 0
        %730 = vmatpush2.bf16.msra.mxu0 0
        %731 = vmatprep.mubr.bf16.mxu0 0
        %732 = vmatmul.mubr.bf16.gmra.mxu0 %v603
        %v733 = vpop.f32.mrf.mxu0
        %v734 = vadd.f32 0.0, %v733
        %v735 = vpop.f32.mrf.mxu0
        %v736 = vadd.f32 0.0, %v735
        %v737 = vpop.f32.mrf.mxu0
        %v738 = vadd.f32 0.0, %v737
        %v739 = vpop.f32.mrf.mxu0
        %v740 = vadd.f32 0.0, %v739
        %741 = vmatprep.mubr.bf16.mxu0 0
        %742 = vmatmul.mubr.bf16.gmra.mxu0 %v604
        %v743 = vpop.f32.mrf.mxu0
        %v744 = vadd.f32 0.0, %v743
        %v745 = vpop.f32.mrf.mxu0
        %v746 = vadd.f32 0.0, %v745
        %v747 = vpop.f32.mrf.mxu0
        %v748 = vadd.f32 0.0, %v747
        %v749 = vpop.f32.mrf.mxu0
        %v750 = vadd.f32 0.0, %v749
        %751 = vmatprep.mubr.bf16.mxu0 0
        %752 = vmatmul.mubr.bf16.gmra.mxu0 %v605
        %v753 = vpop.f32.mrf.mxu0
        %v754 = vadd.f32 0.0, %v753
        %v755 = vpop.f32.mrf.mxu0
        %v756 = vadd.f32 0.0, %v755
        %v757 = vpop.f32.mrf.mxu0
        %v758 = vadd.f32 0.0, %v757
        %v759 = vpop.f32.mrf.mxu0
        %v760 = vadd.f32 0.0, %v759
        %761 = vmatprep.mubr.bf16.mxu0 0
        %762 = vmatmul.mubr.bf16.gmra.mxu0 %v606
        %v763 = vpop.f32.mrf.mxu0
        %v764 = vadd.f32 0.0, %v763
        %v765 = vpop.f32.mrf.mxu0
        %v766 = vadd.f32 0.0, %v765
        %v767 = vpop.f32.mrf.mxu0
        %v768 = vadd.f32 0.0, %v767
        %v769 = vpop.f32.mrf.mxu0
        %v770 = vadd.f32 0.0, %v769
        %771 = vmatprep.mubr.bf16.mxu0 0
        %772 = vmatmul.mubr.bf16.gmra.mxu0 %v607
        %v773 = vpop.f32.mrf.mxu0
        %v774 = vadd.f32 0.0, %v773
        %v775 = vpop.f32.mrf.mxu0
        %v776 = vadd.f32 0.0, %v775
        %v777 = vpop.f32.mrf.mxu0
        %v778 = vadd.f32 0.0, %v777
        %v779 = vpop.f32.mrf.mxu0
        %v780 = vadd.f32 0.0, %v779
        %781 = vmatprep.mubr.bf16.mxu0 0
        %782 = vmatmul.mubr.bf16.gmra.mxu0 %v608
        %v783 = vpop.f32.mrf.mxu0
        %v784 = vadd.f32 0.0, %v783
        %v785 = vpop.f32.mrf.mxu0
        %v786 = vadd.f32 0.0, %v785
        %v787 = vpop.f32.mrf.mxu0
        %v788 = vadd.f32 0.0, %v787
        %v789 = vpop.f32.mrf.mxu0
        %v790 = vadd.f32 0.0, %v789
        %791 = vmatprep.mubr.bf16.mxu0 0
        %792 = vmatmul.mubr.bf16.gmra.mxu0 %v609
        %v793 = vpop.f32.mrf.mxu0
        %v794 = vadd.f32 0.0, %v793
        %v795 = vpop.f32.mrf.mxu0
        %v796 = vadd.f32 0.0, %v795
        %v797 = vpop.f32.mrf.mxu0
        %v798 = vadd.f32 0.0, %v797
        %v799 = vpop.f32.mrf.mxu0
        %v800 = vadd.f32 0.0, %v799
        %801 = vmatprep.mubr.bf16.mxu0 0
        %802 = vmatmul.mubr.bf16.gmra.mxu0 %v610
        %v803 = vpop.f32.mrf.mxu0
        %v804 = vadd.f32 0.0, %v803
        %v805 = vpop.f32.mrf.mxu0
        %v806 = vadd.f32 0.0, %v805
        %v807 = vpop.f32.mrf.mxu0
        %v808 = vadd.f32 0.0, %v807
        %v809 = vpop.f32.mrf.mxu0
        %v810 = vadd.f32 0.0, %v809
        %811 = vdwg.mxu0
        %v812 = vpack.c.bf16 %v738, %v734
        %v813 = vpack.c.bf16 %v748, %v744
        %v814 = vpack.c.bf16 %v758, %v754
        %v815 = vpack.c.bf16 %v768, %v764
        %v816 = vpack.c.bf16 %v778, %v774
        %v817 = vpack.c.bf16 %v788, %v784
        %v818 = vpack.c.bf16 %v798, %v794
        %v819 = vpack.c.bf16 %v808, %v804
        %v820 = vpack.c.bf16 %v740, %v736
        %v821 = vpack.c.bf16 %v750, %v746
        %v822 = vpack.c.bf16 %v760, %v756
        %v823 = vpack.c.bf16 %v770, %v766
        %v824 = vpack.c.bf16 %v780, %v776
        %v825 = vpack.c.bf16 %v790, %v786
        %v826 = vpack.c.bf16 %v800, %v796
        %v827 = vpack.c.bf16 %v810, %v806
        %828 = vmatprep.subr.bf16.mxu0 0
        %829 = vmatpush1.bf16.xpose.msra.mxu0 %v819
        %830 = vmatprep.subr.bf16.mxu0 0
        %831 = vmatpush1.bf16.xpose.msra.mxu0 %v818
        %832 = vmatprep.subr.bf16.mxu0 0
        %833 = vmatpush1.bf16.xpose.msra.mxu0 %v817
        %834 = vmatprep.subr.bf16.mxu0 0
        %835 = vmatpush1.bf16.xpose.msra.mxu0 %v816
        %836 = vmatprep.subr.bf16.mxu0 0
        %837 = vmatpush1.bf16.xpose.msra.mxu0 %v815
        %838 = vmatprep.subr.bf16.mxu0 0
        %839 = vmatpush1.bf16.xpose.msra.mxu0 %v814
        %840 = vmatprep.subr.bf16.mxu0 0
        %841 = vmatpush1.bf16.xpose.msra.mxu0 %v813
        %842 = vmatprep.subr.bf16.mxu0 0
        %843 = vmatpush1.bf16.xpose.msra.mxu0 %v812
        %844 = vmatprep.subr.bf16.mxu0 0
        %845 = vmatpush2.bf16.xpose.msra.mxu0 0
        %846 = vmatprep.subr.bf16.mxu0 0
        %847 = vmatpush2.bf16.xpose.msra.mxu0 0
        %848 = vmatprep.subr.bf16.mxu0 0
        %849 = vmatpush2.bf16.xpose.msra.mxu0 0
        %850 = vmatprep.subr.bf16.mxu0 0
        %851 = vmatpush2.bf16.xpose.msra.mxu0 0
        %852 = vmatprep.subr.bf16.mxu0 0
        %853 = vmatpush2.bf16.xpose.msra.mxu0 0
        %854 = vmatprep.subr.bf16.mxu0 0
        %855 = vmatpush2.bf16.xpose.msra.mxu0 0
        %856 = vmatprep.subr.bf16.mxu0 0
        %857 = vmatpush2.bf16.xpose.msra.mxu0 0
        %858 = vmatprep.subr.bf16.mxu0 0
        %859 = vmatpush2.bf16.xpose.msra.mxu0 0
        %860 = vmatprep.mubr.bf16.mxu0 0
        %861 = vmatmul.mubr.bf16.gmra.mxu0 %v547
        %v862 = vpop.f32.mrf.mxu0
        %v863 = vadd.f32 0.0, %v862
        %v864 = vpop.f32.mrf.mxu0
        %v865 = vpop.f32.mrf.mxu0
        %v866 = vadd.f32 0.0, %v865
        %v867 = vpop.f32.mrf.mxu0
        %868 = vmatprep.mubr.bf16.mxu0 0
        %869 = vmatmul.mubr.bf16.gmra.mxu0 %v548
        %v870 = vpop.f32.mrf.mxu0
        %v871 = vadd.f32 0.0, %v870
        %v872 = vpop.f32.mrf.mxu0
        %v873 = vpop.f32.mrf.mxu0
        %v874 = vadd.f32 0.0, %v873
        %v875 = vpop.f32.mrf.mxu0
        %876 = vmatprep.mubr.bf16.mxu0 0
        %877 = vmatmul.mubr.bf16.gmra.mxu0 %v549
        %v878 = vpop.f32.mrf.mxu0
        %v879 = vadd.f32 0.0, %v878
        %v880 = vpop.f32.mrf.mxu0
        %v881 = vpop.f32.mrf.mxu0
        %v882 = vadd.f32 0.0, %v881
        %v883 = vpop.f32.mrf.mxu0
        %884 = vmatprep.mubr.bf16.mxu0 0
        %885 = vmatmul.mubr.bf16.gmra.mxu0 %v550
        %v886 = vpop.f32.mrf.mxu0
        %v887 = vadd.f32 0.0, %v886
        %v888 = vpop.f32.mrf.mxu0
        %v889 = vpop.f32.mrf.mxu0
        %v890 = vadd.f32 0.0, %v889
        %v891 = vpop.f32.mrf.mxu0
        %892 = vmatprep.mubr.bf16.mxu0 0
        %893 = vmatmul.mubr.bf16.gmra.mxu0 %v551
        %v894 = vpop.f32.mrf.mxu0
        %v895 = vadd.f32 0.0, %v894
        %v896 = vpop.f32.mrf.mxu0
        %v897 = vpop.f32.mrf.mxu0
        %v898 = vadd.f32 0.0, %v897
        %v899 = vpop.f32.mrf.mxu0
        %900 = vmatprep.mubr.bf16.mxu0 0
        %901 = vmatmul.mubr.bf16.gmra.mxu0 %v552
        %v902 = vpop.f32.mrf.mxu0
        %v903 = vadd.f32 0.0, %v902
        %v904 = vpop.f32.mrf.mxu0
        %v905 = vpop.f32.mrf.mxu0
        %v906 = vadd.f32 0.0, %v905
        %v907 = vpop.f32.mrf.mxu0
        %908 = vmatprep.mubr.bf16.mxu0 0
        %909 = vmatmul.mubr.bf16.gmra.mxu0 %v553
        %v910 = vpop.f32.mrf.mxu0
        %v911 = vadd.f32 0.0, %v910
        %v912 = vpop.f32.mrf.mxu0
        %v913 = vpop.f32.mrf.mxu0
        %v914 = vadd.f32 0.0, %v913
        %v915 = vpop.f32.mrf.mxu0
        %916 = vmatprep.mubr.bf16.mxu0 0
        %917 = vmatmul.mubr.bf16.gmra.mxu0 %v554
        %v918 = vpop.f32.mrf.mxu0
        %v919 = vadd.f32 0.0, %v918
        %v920 = vpop.f32.mrf.mxu0
        %v921 = vpop.f32.mrf.mxu0
        %v922 = vadd.f32 0.0, %v921
        %v923 = vpop.f32.mrf.mxu0
        %924 = vdwg.mxu0
        %v925 = vmul.f32 %v863, 0.088388346
        %v926 = vmul.f32 %v866, 0.088388346
        %v927 = vmul.f32 %v871, 0.088388346
        %v928 = vmul.f32 %v874, 0.088388346
        %v929 = vmul.f32 %v879, 0.088388346
        %v930 = vmul.f32 %v882, 0.088388346
        %v931 = vmul.f32 %v887, 0.088388346
        %v932 = vmul.f32 %v890, 0.088388346
        %v933 = vmul.f32 %v895, 0.088388346
        %v934 = vmul.f32 %v898, 0.088388346
        %v935 = vmul.f32 %v903, 0.088388346
        %v936 = vmul.f32 %v906, 0.088388346
        %v937 = vmul.f32 %v911, 0.088388346
        %v938 = vmul.f32 %v914, 0.088388346
        %v939 = vmul.f32 %v919, 0.088388346
        %v940 = vmul.f32 %v922, 0.088388346
        %941 = vmax.xlane.f32.xlu0 %v925
        %v942 = vpop.xlane.xlu0 %941
        %943 = vmax.xlane.f32.xlu0 %v926
        %v944 = vpop.xlane.xlu0 %943
        %945 = vmax.xlane.f32.xlu0 %v927
        %v946 = vpop.xlane.xlu0 %945
        %947 = vmax.xlane.f32.xlu0 %v928
        %v948 = vpop.xlane.xlu0 %947
        %949 = vmax.xlane.f32.xlu0 %v929
        %v950 = vpop.xlane.xlu0 %949
        %951 = vmax.xlane.f32.xlu0 %v930
        %v952 = vpop.xlane.xlu0 %951
        %953 = vmax.xlane.f32.xlu0 %v931
        %v954 = vpop.xlane.xlu0 %953
        %955 = vmax.xlane.f32.xlu0 %v932
        %v956 = vpop.xlane.xlu0 %955
        %957 = vmax.xlane.f32.xlu0 %v933
        %v958 = vpop.xlane.xlu0 %957
        %959 = vmax.xlane.f32.xlu0 %v934
        %v960 = vpop.xlane.xlu0 %959
        %961 = vmax.xlane.f32.xlu0 %v935
        %v962 = vpop.xlane.xlu0 %961
        %963 = vmax.xlane.f32.xlu0 %v936
        %v964 = vpop.xlane.xlu0 %963
        %965 = vmax.xlane.f32.xlu0 %v937
        %v966 = vpop.xlane.xlu0 %965
        %967 = vmax.xlane.f32.xlu0 %v938
        %v968 = vpop.xlane.xlu0 %967
        %969 = vmax.xlane.f32.xlu0 %v939
        %v970 = vpop.xlane.xlu0 %969
        %971 = vmax.xlane.f32.xlu0 %v940
        %v972 = vpop.xlane.xlu0 %971
        %v973 = vsub.f32 %v925, %v942
        %v974 = vsub.f32 %v926, %v944
        %v975 = vsub.f32 %v927, %v946
        %v976 = vsub.f32 %v928, %v948
        %v977 = vsub.f32 %v929, %v950
        %v978 = vsub.f32 %v930, %v952
        %v979 = vsub.f32 %v931, %v954
        %v980 = vsub.f32 %v932, %v956
        %v981 = vsub.f32 %v933, %v958
        %v982 = vsub.f32 %v934, %v960
        %v983 = vsub.f32 %v935, %v962
        %v984 = vsub.f32 %v936, %v964
        %v985 = vsub.f32 %v937, %v966
        %v986 = vsub.f32 %v938, %v968
        %v987 = vsub.f32 %v939, %v970
        %v988 = vsub.f32 %v940, %v972
        %v989 = vmul.f32 %v973, 1.442695
        %v990 = vpow.pop %v989
        %v991 = vmul.f32 %v974, 1.442695
        %v992 = vpow.pop %v991
        %v993 = vmul.f32 %v975, 1.442695
        %v994 = vpow.pop %v993
        %v995 = vmul.f32 %v976, 1.442695
        %v996 = vpow.pop %v995
        %v997 = vmul.f32 %v977, 1.442695
        %v998 = vpow.pop %v997
        %v999 = vmul.f32 %v978, 1.442695
        %v1000 = vpow.pop %v999
        %v1001 = vmul.f32 %v979, 1.442695
        %v1002 = vpow.pop %v1001
        %v1003 = vmul.f32 %v980, 1.442695
        %v1004 = vpow.pop %v1003
        %v1005 = vmul.f32 %v981, 1.442695
        %v1006 = vpow.pop %v1005
        %v1007 = vmul.f32 %v982, 1.442695
        %v1008 = vpow.pop %v1007
        %v1009 = vmul.f32 %v983, 1.442695
        %v1010 = vpow.pop %v1009
        %v1011 = vmul.f32 %v984, 1.442695
        %v1012 = vpow.pop %v1011
        %v1013 = vmul.f32 %v985, 1.442695
        %v1014 = vpow.pop %v1013
        %v1015 = vmul.f32 %v986, 1.442695
        %v1016 = vpow.pop %v1015
        %v1017 = vmul.f32 %v987, 1.442695
        %v1018 = vpow.pop %v1017
        %v1019 = vmul.f32 %v988, 1.442695
        %v1020 = vpow.pop %v1019
        %1021 = vadd.xlane.f32.xlu0 %v990
        %v1022 = vpop.xlane.xlu0 %1021
        %1023 = vadd.xlane.f32.xlu0 %v992
        %v1024 = vpop.xlane.xlu0 %1023
        %1025 = vadd.xlane.f32.xlu0 %v994
        %v1026 = vpop.xlane.xlu0 %1025
        %1027 = vadd.xlane.f32.xlu0 %v996
        %v1028 = vpop.xlane.xlu0 %1027
        %1029 = vadd.xlane.f32.xlu0 %v998
        %v1030 = vpop.xlane.xlu0 %1029
        %1031 = vadd.xlane.f32.xlu0 %v1000
        %v1032 = vpop.xlane.xlu0 %1031
        %1033 = vadd.xlane.f32.xlu0 %v1002
        %v1034 = vpop.xlane.xlu0 %1033
        %1035 = vadd.xlane.f32.xlu0 %v1004
        %v1036 = vpop.xlane.xlu0 %1035
        %1037 = vadd.xlane.f32.xlu0 %v1006
        %v1038 = vpop.xlane.xlu0 %1037
        %1039 = vadd.xlane.f32.xlu0 %v1008
        %v1040 = vpop.xlane.xlu0 %1039
        %1041 = vadd.xlane.f32.xlu0 %v1010
        %v1042 = vpop.xlane.xlu0 %1041
        %1043 = vadd.xlane.f32.xlu0 %v1012
        %v1044 = vpop.xlane.xlu0 %1043
        %1045 = vadd.xlane.f32.xlu0 %v1014
        %v1046 = vpop.xlane.xlu0 %1045
        %1047 = vadd.xlane.f32.xlu0 %v1016
        %v1048 = vpop.xlane.xlu0 %1047
        %1049 = vadd.xlane.f32.xlu0 %v1018
        %v1050 = vpop.xlane.xlu0 %1049
        %1051 = vadd.xlane.f32.xlu0 %v1020
        %v1052 = vpop.xlane.xlu0 %1051
        %v1053 = vpack.c.bf16 %v992, %v990
        %v1054 = vpack.c.bf16 %v996, %v994
        %v1055 = vpack.c.bf16 %v1000, %v998
        %v1056 = vpack.c.bf16 %v1004, %v1002
        %v1057 = vpack.c.bf16 %v1008, %v1006
        %v1058 = vpack.c.bf16 %v1012, %v1010
        %v1059 = vpack.c.bf16 %v1016, %v1014
        %v1060 = vpack.c.bf16 %v1020, %v1018
        %1061 = vmatprep.subr.bf16.mxu0 0
        %1062 = vmatpush1.bf16.msra.mxu0 %v827
        %1063 = vmatprep.subr.bf16.mxu0 0
        %1064 = vmatpush1.bf16.msra.mxu0 %v826
        %1065 = vmatprep.subr.bf16.mxu0 0
        %1066 = vmatpush1.bf16.msra.mxu0 %v825
        %1067 = vmatprep.subr.bf16.mxu0 0
        %1068 = vmatpush1.bf16.msra.mxu0 %v824
        %1069 = vmatprep.subr.bf16.mxu0 0
        %1070 = vmatpush1.bf16.msra.mxu0 %v823
        %1071 = vmatprep.subr.bf16.mxu0 0
        %1072 = vmatpush1.bf16.msra.mxu0 %v822
        %1073 = vmatprep.subr.bf16.mxu0 0
        %1074 = vmatpush1.bf16.msra.mxu0 %v821
        %1075 = vmatprep.subr.bf16.mxu0 0
        %1076 = vmatpush1.bf16.msra.mxu0 %v820
        %1077 = vmatprep.subr.bf16.mxu0 0
        %1078 = vmatpush2.bf16.msra.mxu0 0
        %1079 = vmatprep.subr.bf16.mxu0 0
        %1080 = vmatpush2.bf16.msra.mxu0 0
        %1081 = vmatprep.subr.bf16.mxu0 0
        %1082 = vmatpush2.bf16.msra.mxu0 0
        %1083 = vmatprep.subr.bf16.mxu0 0
        %1084 = vmatpush2.bf16.msra.mxu0 0
        %1085 = vmatprep.subr.bf16.mxu0 0
        %1086 = vmatpush2.bf16.msra.mxu0 0
        %1087 = vmatprep.subr.bf16.mxu0 0
        %1088 = vmatpush2.bf16.msra.mxu0 0
        %1089 = vmatprep.subr.bf16.mxu0 0
        %1090 = vmatpush2.bf16.msra.mxu0 0
        %1091 = vmatprep.subr.bf16.mxu0 0
        %1092 = vmatpush2.bf16.msra.mxu0 0
        %1093 = vmatprep.mubr.bf16.mxu0 0
        %1094 = vmatmul.mubr.bf16.gmra.mxu0 %v1053
        %v1095 = vpop.f32.mrf.mxu0
        %v1096 = vadd.f32 0.0, %v1095
        %v1097 = vpop.f32.mrf.mxu0
        %v1098 = vpop.f32.mrf.mxu0
        %v1099 = vadd.f32 0.0, %v1098
        %v1100 = vpop.f32.mrf.mxu0
        %1101 = vmatprep.mubr.bf16.mxu0 0
        %1102 = vmatmul.mubr.bf16.gmra.mxu0 %v1054
        %v1103 = vpop.f32.mrf.mxu0
        %v1104 = vadd.f32 0.0, %v1103
        %v1105 = vpop.f32.mrf.mxu0
        %v1106 = vpop.f32.mrf.mxu0
        %v1107 = vadd.f32 0.0, %v1106
        %v1108 = vpop.f32.mrf.mxu0
        %1109 = vmatprep.mubr.bf16.mxu0 0
        %1110 = vmatmul.mubr.bf16.gmra.mxu0 %v1055
        %v1111 = vpop.f32.mrf.mxu0
        %v1112 = vadd.f32 0.0, %v1111
        %v1113 = vpop.f32.mrf.mxu0
        %v1114 = vpop.f32.mrf.mxu0
        %v1115 = vadd.f32 0.0, %v1114
        %v1116 = vpop.f32.mrf.mxu0
        %1117 = vmatprep.mubr.bf16.mxu0 0
        %1118 = vmatmul.mubr.bf16.gmra.mxu0 %v1056
        %v1119 = vpop.f32.mrf.mxu0
        %v1120 = vadd.f32 0.0, %v1119
        %v1121 = vpop.f32.mrf.mxu0
        %v1122 = vpop.f32.mrf.mxu0
        %v1123 = vadd.f32 0.0, %v1122
        %v1124 = vpop.f32.mrf.mxu0
        %1125 = vmatprep.mubr.bf16.mxu0 0
        %1126 = vmatmul.mubr.bf16.gmra.mxu0 %v1057
        %v1127 = vpop.f32.mrf.mxu0
        %v1128 = vadd.f32 0.0, %v1127
        %v1129 = vpop.f32.mrf.mxu0
        %v1130 = vpop.f32.mrf.mxu0
        %v1131 = vadd.f32 0.0, %v1130
        %v1132 = vpop.f32.mrf.mxu0
        %1133 = vmatprep.mubr.bf16.mxu0 0
        %1134 = vmatmul.mubr.bf16.gmra.mxu0 %v1058
        %v1135 = vpop.f32.mrf.mxu0
        %v1136 = vadd.f32 0.0, %v1135
        %v1137 = vpop.f32.mrf.mxu0
        %v1138 = vpop.f32.mrf.mxu0
        %v1139 = vadd.f32 0.0, %v1138
        %v1140 = vpop.f32.mrf.mxu0
        %1141 = vmatprep.mubr.bf16.mxu0 0
        %1142 = vmatmul.mubr.bf16.gmra.mxu0 %v1059
        %v1143 = vpop.f32.mrf.mxu0
        %v1144 = vadd.f32 0.0, %v1143
        %v1145 = vpop.f32.mrf.mxu0
        %v1146 = vpop.f32.mrf.mxu0
        %v1147 = vadd.f32 0.0, %v1146
        %v1148 = vpop.f32.mrf.mxu0
        %1149 = vmatprep.mubr.bf16.mxu0 0
        %1150 = vmatmul.mubr.bf16.gmra.mxu0 %v1060
        %v1151 = vpop.f32.mrf.mxu0
        %v1152 = vadd.f32 0.0, %v1151
        %v1153 = vpop.f32.mrf.mxu0
        %v1154 = vpop.f32.mrf.mxu0
        %v1155 = vadd.f32 0.0, %v1154
        %v1156 = vpop.f32.mrf.mxu0
        %1157 = vdwg.mxu0
        %v1158 = vrcp.pop %v1022
        %v1159 = vrcp.pop %v1024
        %v1160 = vrcp.pop %v1026
        %v1161 = vrcp.pop %v1028
        %v1162 = vrcp.pop %v1030
        %v1163 = vrcp.pop %v1032
        %v1164 = vrcp.pop %v1034
        %v1165 = vrcp.pop %v1036
        %v1166 = vrcp.pop %v1038
        %v1167 = vrcp.pop %v1040
        %v1168 = vrcp.pop %v1042
        %v1169 = vrcp.pop %v1044
        %v1170 = vrcp.pop %v1046
        %v1171 = vrcp.pop %v1048
        %v1172 = vrcp.pop %v1050
        %v1173 = vrcp.pop %v1052
        %v1174 = vmul.f32 %v1096, %v1158
        %v1175 = vmul.f32 %v1099, %v1159
        %v1176 = vmul.f32 %v1104, %v1160
        %v1177 = vmul.f32 %v1107, %v1161
        %v1178 = vmul.f32 %v1112, %v1162
        %v1179 = vmul.f32 %v1115, %v1163
        %v1180 = vmul.f32 %v1120, %v1164
        %v1181 = vmul.f32 %v1123, %v1165
        %v1182 = vmul.f32 %v1128, %v1166
        %v1183 = vmul.f32 %v1131, %v1167
        %v1184 = vmul.f32 %v1136, %v1168
        %v1185 = vmul.f32 %v1139, %v1169
        %v1186 = vmul.f32 %v1144, %v1170
        %v1187 = vmul.f32 %v1147, %v1171
        %v1188 = vmul.f32 %v1152, %v1172
        %v1189 = vmul.f32 %v1155, %v1173
        %v1190 = vpack.c.bf16 %v1175, %v1174
        %v1191 = vpack.c.bf16 %v1177, %v1176
        %v1192 = vpack.c.bf16 %v1179, %v1178
        %v1193 = vpack.c.bf16 %v1181, %v1180
        %v1194 = vpack.c.bf16 %v1183, %v1182
        %v1195 = vpack.c.bf16 %v1185, %v1184
        %v1196 = vpack.c.bf16 %v1187, %v1186
        %v1197 = vpack.c.bf16 %v1189, %v1188
        %v1198 = vld [vmem:[#allocation8] sm:$0xf]
        %v1199 = vld [vmem:[#allocation8 + $0x4] sm:$0xf]
        %v1200 = vld [vmem:[#allocation8 + $0x8] sm:$0xf]
        %v1201 = vld [vmem:[#allocation8 + $0xc] sm:$0xf]
        %v1202 = vld [vmem:[#allocation8 + $0x10] sm:$0xf]
        %v1203 = vld [vmem:[#allocation8 + $0x14] sm:$0xf]
        %v1204 = vld [vmem:[#allocation8 + $0x18] sm:$0xf]
        %v1205 = vld [vmem:[#allocation8 + $0x1c] sm:$0xf]
        %v1206 = vld [vmem:[#allocation8 + $0x20] sm:$0xf]
        %v1207 = vld [vmem:[#allocation8 + $0x24] sm:$0xf]
        %v1208 = vld [vmem:[#allocation8 + $0x28] sm:$0xf]
        %v1209 = vld [vmem:[#allocation8 + $0x2c] sm:$0xf]
        %v1210 = vld [vmem:[#allocation8 + $0x30] sm:$0xf]
        %v1211 = vld [vmem:[#allocation8 + $0x34] sm:$0xf]
        %v1212 = vld [vmem:[#allocation8 + $0x38] sm:$0xf]
        %v1213 = vld [vmem:[#allocation8 + $0x3c] sm:$0xf]
        %v1230 = vunpack.c.l.b16 %v1198
        %v1231 = vunpack.c.l.b16 %v1199
        %v1232 = vunpack.c.l.b16 %v1200
        %v1233 = vunpack.c.l.b16 %v1201
        %v1234 = vunpack.c.l.b16 %v1202
        %v1235 = vunpack.c.l.b16 %v1203
        %v1236 = vunpack.c.l.b16 %v1204
        %v1237 = vunpack.c.l.b16 %v1205
        %v1238 = vunpack.c.l.b16 %v1206
        %v1239 = vunpack.c.l.b16 %v1207
        %v1240 = vunpack.c.l.b16 %v1208
        %v1241 = vunpack.c.l.b16 %v1209
        %v1242 = vunpack.c.l.b16 %v1210
        %v1243 = vunpack.c.l.b16 %v1211
        %v1244 = vunpack.c.l.b16 %v1212
        %v1245 = vunpack.c.l.b16 %v1213
        %v1246 = vpack.c.b16 %v1231, %v1230
        %v1247 = vpack.c.b16 %v1233, %v1232
        %v1248 = vpack.c.b16 %v1235, %v1234
        %v1249 = vpack.c.b16 %v1237, %v1236
        %v1250 = vpack.c.b16 %v1239, %v1238
        %v1251 = vpack.c.b16 %v1241, %v1240
        %v1252 = vpack.c.b16 %v1243, %v1242
        %v1253 = vpack.c.b16 %v1245, %v1244
        %1262 = vmatprep.subr.bf16.mxu0 0
        %1263 = vmatpush1.bf16.msra.mxu0 %v1253
        %1264 = vmatprep.subr.bf16.mxu0 0
        %1265 = vmatpush1.bf16.msra.mxu0 %v1252
        %1266 = vmatprep.subr.bf16.mxu0 0
        %1267 = vmatpush1.bf16.msra.mxu0 %v1251
        %1268 = vmatprep.subr.bf16.mxu0 0
        %1269 = vmatpush1.bf16.msra.mxu0 %v1250
        %1270 = vmatprep.subr.bf16.mxu0 0
        %1271 = vmatpush1.bf16.msra.mxu0 %v1249
        %1272 = vmatprep.subr.bf16.mxu0 0
        %1273 = vmatpush1.bf16.msra.mxu0 %v1248
        %1274 = vmatprep.subr.bf16.mxu0 0
        %1275 = vmatpush1.bf16.msra.mxu0 %v1247
        %1276 = vmatprep.subr.bf16.mxu0 0
        %1277 = vmatpush1.bf16.msra.mxu0 %v1246
        %1278 = vmatprep.subr.bf16.mxu0 0
        %1279 = vmatpush2.bf16.msra.mxu0 0
        %1280 = vmatprep.subr.bf16.mxu0 0
        %1281 = vmatpush2.bf16.msra.mxu0 0
        %1282 = vmatprep.subr.bf16.mxu0 0
        %1283 = vmatpush2.bf16.msra.mxu0 0
        %1284 = vmatprep.subr.bf16.mxu0 0
        %1285 = vmatpush2.bf16.msra.mxu0 0
        %1286 = vmatprep.subr.bf16.mxu0 0
        %1287 = vmatpush2.bf16.msra.mxu0 0
        %1288 = vmatprep.subr.bf16.mxu0 0
        %1289 = vmatpush2.bf16.msra.mxu0 0
        %1290 = vmatprep.subr.bf16.mxu0 0
        %1291 = vmatpush2.bf16.msra.mxu0 0
        %1292 = vmatprep.subr.bf16.mxu0 0
        %1293 = vmatpush2.bf16.msra.mxu0 0
        %1294 = vmatprep.mubr.bf16.mxu0 0
        %1295 = vmatmul.mubr.bf16.gmra.mxu0 %v1190
        %v1296 = vpop.f32.mrf.mxu0
        %v1297 = vadd.f32 0.0, %v1296
        %v1298 = vpop.f32.mrf.mxu0
        %v1299 = vpop.f32.mrf.mxu0
        %v1300 = vadd.f32 0.0, %v1299
        %v1301 = vpop.f32.mrf.mxu0
        %1302 = vmatprep.mubr.bf16.mxu0 0
        %1303 = vmatmul.mubr.bf16.gmra.mxu0 %v1191
        %v1304 = vpop.f32.mrf.mxu0
        %v1305 = vadd.f32 0.0, %v1304
        %v1306 = vpop.f32.mrf.mxu0
        %v1307 = vpop.f32.mrf.mxu0
        %v1308 = vadd.f32 0.0, %v1307
        %v1309 = vpop.f32.mrf.mxu0
        %1310 = vmatprep.mubr.bf16.mxu0 0
        %1311 = vmatmul.mubr.bf16.gmra.mxu0 %v1192
        %v1312 = vpop.f32.mrf.mxu0
        %v1313 = vadd.f32 0.0, %v1312
        %v1314 = vpop.f32.mrf.mxu0
        %v1315 = vpop.f32.mrf.mxu0
        %v1316 = vadd.f32 0.0, %v1315
        %v1317 = vpop.f32.mrf.mxu0
        %1318 = vmatprep.mubr.bf16.mxu0 0
        %1319 = vmatmul.mubr.bf16.gmra.mxu0 %v1193
        %v1320 = vpop.f32.mrf.mxu0
        %v1321 = vadd.f32 0.0, %v1320
        %v1322 = vpop.f32.mrf.mxu0
        %v1323 = vpop.f32.mrf.mxu0
        %v1324 = vadd.f32 0.0, %v1323
        %v1325 = vpop.f32.mrf.mxu0
        %1326 = vmatprep.mubr.bf16.mxu0 0
        %1327 = vmatmul.mubr.bf16.gmra.mxu0 %v1194
        %v1328 = vpop.f32.mrf.mxu0
        %v1329 = vadd.f32 0.0, %v1328
        %v1330 = vpop.f32.mrf.mxu0
        %v1331 = vpop.f32.mrf.mxu0
        %v1332 = vadd.f32 0.0, %v1331
        %v1333 = vpop.f32.mrf.mxu0
        %1334 = vmatprep.mubr.bf16.mxu0 0
        %1335 = vmatmul.mubr.bf16.gmra.mxu0 %v1195
        %v1336 = vpop.f32.mrf.mxu0
        %v1337 = vadd.f32 0.0, %v1336
        %v1338 = vpop.f32.mrf.mxu0
        %v1339 = vpop.f32.mrf.mxu0
        %v1340 = vadd.f32 0.0, %v1339
        %v1341 = vpop.f32.mrf.mxu0
        %1342 = vmatprep.mubr.bf16.mxu0 0
        %1343 = vmatmul.mubr.bf16.gmra.mxu0 %v1196
        %v1344 = vpop.f32.mrf.mxu0
        %v1345 = vadd.f32 0.0, %v1344
        %v1346 = vpop.f32.mrf.mxu0
        %v1347 = vpop.f32.mrf.mxu0
        %v1348 = vadd.f32 0.0, %v1347
        %v1349 = vpop.f32.mrf.mxu0
        %1350 = vmatprep.mubr.bf16.mxu0 0
        %1351 = vmatmul.mubr.bf16.gmra.mxu0 %v1197
        %v1352 = vpop.f32.mrf.mxu0
        %v1353 = vadd.f32 0.0, %v1352
        %v1354 = vpop.f32.mrf.mxu0
        %v1355 = vpop.f32.mrf.mxu0
        %v1356 = vadd.f32 0.0, %v1355
        %v1357 = vpop.f32.mrf.mxu0
        %1358 = vdwg.mxu0
        %v1359 = vunpack.c.l.bf16 %v306
        %v1360 = vunpack.c.l.bf16 %v307
        %v1361 = vunpack.c.l.bf16 %v308
        %v1362 = vunpack.c.l.bf16 %v309
        %v1363 = vunpack.c.l.bf16 %v310
        %v1364 = vunpack.c.l.bf16 %v311
        %v1365 = vunpack.c.l.bf16 %v312
        %v1366 = vunpack.c.l.bf16 %v313
        %v1367 = vunpack.c.l.bf16 %v314
        %v1368 = vunpack.c.l.bf16 %v315
        %v1369 = vunpack.c.l.bf16 %v316
        %v1370 = vunpack.c.l.bf16 %v317
        %v1371 = vunpack.c.l.bf16 %v318
        %v1372 = vunpack.c.l.bf16 %v319
        %v1373 = vunpack.c.l.bf16 %v320
        %v1374 = vunpack.c.l.bf16 %v321
        %v1375 = vadd.f32 %v1359, %v1297
        %v1376 = vadd.f32 %v1360, %v1300
        %v1377 = vadd.f32 %v1361, %v1305
        %v1378 = vadd.f32 %v1362, %v1308
        %v1379 = vadd.f32 %v1363, %v1313
        %v1380 = vadd.f32 %v1364, %v1316
        %v1381 = vadd.f32 %v1365, %v1321
        %v1382 = vadd.f32 %v1366, %v1324
        %v1383 = vadd.f32 %v1367, %v1329
        %v1384 = vadd.f32 %v1368, %v1332
        %v1385 = vadd.f32 %v1369, %v1337
        %v1386 = vadd.f32 %v1370, %v1340
        %v1387 = vadd.f32 %v1371, %v1345
        %v1388 = vadd.f32 %v1372, %v1348
        %v1389 = vadd.f32 %v1373, %v1353
        %v1390 = vadd.f32 %v1374, %v1356
        %v1391 = vpack.c.bf16 %v1376, %v1375
        %v1392 = vpack.c.bf16 %v1378, %v1377
        %v1393 = vpack.c.bf16 %v1380, %v1379
        %v1394 = vpack.c.bf16 %v1382, %v1381
        %v1395 = vpack.c.bf16 %v1384, %v1383
        %v1396 = vpack.c.bf16 %v1386, %v1385
        %v1397 = vpack.c.bf16 %v1388, %v1387
        %v1398 = vpack.c.bf16 %v1390, %v1389
        %v1407 = vunpack.c.l.b16 %v1391
        %v1408 = vunpack.c.h.b16 %v1391
        %v1409 = vunpack.c.l.b16 %v1392
        %v1410 = vunpack.c.h.b16 %v1392
        %v1411 = vunpack.c.l.b16 %v1393
        %v1412 = vunpack.c.h.b16 %v1393
        %v1413 = vunpack.c.l.b16 %v1394
        %v1414 = vunpack.c.h.b16 %v1394
        %v1415 = vunpack.c.l.b16 %v1395
        %v1416 = vunpack.c.h.b16 %v1395
        %v1417 = vunpack.c.l.b16 %v1396
        %v1418 = vunpack.c.h.b16 %v1396
        %v1419 = vunpack.c.l.b16 %v1397
        %v1420 = vunpack.c.h.b16 %v1397
        %v1421 = vunpack.c.l.b16 %v1398
        %v1422 = vunpack.c.h.b16 %v1398
        %v1423 = vpack.c.b16 %v1407, %v1407
        %v1424 = vpack.c.b16 %v1408, %v1408
        %v1425 = vpack.c.b16 %v1409, %v1409
        %v1426 = vpack.c.b16 %v1410, %v1410
        %v1427 = vpack.c.b16 %v1411, %v1411
        %v1428 = vpack.c.b16 %v1412, %v1412
        %v1429 = vpack.c.b16 %v1413, %v1413
        %v1430 = vpack.c.b16 %v1414, %v1414
        %v1431 = vpack.c.b16 %v1415, %v1415
        %v1432 = vpack.c.b16 %v1416, %v1416
        %v1433 = vpack.c.b16 %v1417, %v1417
        %v1434 = vpack.c.b16 %v1418, %v1418
        %v1435 = vpack.c.b16 %v1419, %v1419
        %v1436 = vpack.c.b16 %v1420, %v1420
        %v1437 = vpack.c.b16 %v1421, %v1421
        %v1438 = vpack.c.b16 %v1422, %v1422
        %1455 = vst [vmem:[%s302] sm:$0xf] %v1423
        %1456 = vst [vmem:[%s302 + $0x4] sm:$0xf] %v1424
        %1457 = vst [vmem:[%s302 + $0x8] sm:$0xf] %v1425
        %1458 = vst [vmem:[%s302 + $0xc] sm:$0xf] %v1426
        %1459 = vst [vmem:[%s302 + $0x10] sm:$0xf] %v1427
        %1460 = vst [vmem:[%s302 + $0x14] sm:$0xf] %v1428
        %1461 = vst [vmem:[%s302 + $0x18] sm:$0xf] %v1429
        %1462 = vst [vmem:[%s302 + $0x1c] sm:$0xf] %v1430
        %1463 = vst [vmem:[%s302 + $0x20] sm:$0xf] %v1431
        %1464 = vst [vmem:[%s302 + $0x24] sm:$0xf] %v1432
        %1465 = vst [vmem:[%s302 + $0x28] sm:$0xf] %v1433
        %1466 = vst [vmem:[%s302 + $0x2c] sm:$0xf] %v1434
        %1467 = vst [vmem:[%s302 + $0x30] sm:$0xf] %v1435
        %1468 = vst [vmem:[%s302 + $0x34] sm:$0xf] %v1436
        %1469 = vst [vmem:[%s302 + $0x38] sm:$0xf] %v1437
        %1470 = vst [vmem:[%s302 + $0x3c] sm:$0xf] %v1438
        %s1471 = sand.u32 %s143, 1
        %s1472 = scalar_lea.sflag [#allocation4], %s1471
        %s1473 = sand.u32 %s143, 1
        %s1474 = smul.addr %s1473, 64
        %s1475 = scalar_lea.vmem [#allocation10], %s1474
        // Predicated region
        $region53: #{tpu_custom_call.1} parent=35 // pred_check
          %p1476 = pneg %p153
        $region54: #{tpu_custom_call.1} parent=35 // pred_check_branch
          %1478 = sbr.rel (%p1476) target = $region56
        $region55: #{tpu_custom_call.1} parent=35 // pred_region
          %s1479 = smul.u32 16, %s30
          %s1481 = ssub.s32 1024, 1024
          %1482 = vsyncadd %s1472, %s1481
          %s1483 = smul.addr %s29, 16
          %s1484 = sadd.s32 %s1479, %s1483
          %s1485 = smul.addr %s1484, 64
          %s1486 = scalar_lea.hbm %s4, %s1485
          %s1487 = sshll.u32 %s1475, 4
          %s1488 = int_to_ptr.vmem [resolvable:$true] %s1487
          %1493 = dma.vmem_to_hbm [thread:$0]  %s1488, 1024, %s1486, %s1472, 64, 64, 4
        $region56: #{tpu_custom_call.1} parent=35 // pred_fallthru
          _
      $region36: #{tpu_custom_call.1} parent=5 // pred_fallthru
        _
      %p1494 = scmp.le.s32.totalorder 2, %s20
      // Predicated region
      $region57: #{tpu_custom_call.1} parent=5 // pred_check
        %p1495 = pneg %p1494
      $region58: #{tpu_custom_call.1} parent=5 // pred_check_branch
        %1497 = sbr.rel (%p1495) target = $region60
      $region59: #{tpu_custom_call.1} parent=5 // pred_region
        %s1498 = ssub.s32 %s20, 2
        // Predicated region
        $region61: #{tpu_custom_call.1} parent=59 // pred_check
          %p1499 = pneg %p159
        $region62: #{tpu_custom_call.1} parent=59 // pred_check_branch
          %1501 = sbr.rel (%p1499) target = $region64
        $region63: #{tpu_custom_call.1} parent=59 // pred_region
          %s1502 = sand.u32 %s144, 1
          %s1503 = scalar_lea.sflag [#allocation4], %s1502
          %s1504 = sand.u32 %s144, 1
          %s1505 = smul.addr %s1504, 64
          %s1506 = scalar_lea.vmem [#allocation10], %s1505
          %1507 = dma.done %s1503, 1024
        $region64: #{tpu_custom_call.1} parent=59 // pred_fallthru
          _
      $region60: #{tpu_custom_call.1} parent=5 // pred_fallthru
        _
    $region6: #{tpu_custom_call.1} parent=1 // loop_footer
      %s24 = sadd.s32 1, %s20
    $region7: #{tpu_custom_call.1} parent=1 // loop_footer_branch
      %19 = sbr.rel target = $region3
    $region8: #{tpu_custom_call.1} parent=1 // loop_exit
      _
    %1508 = vsyncpa [#allocation3], 1
    %s1509 = scalar_lea.sflag [#allocation3], 1
    %1510 = vsyncpa %s1509, 1
    %1511 = vsyncpa [#allocation6], 1
    %s1512 = scalar_lea.sflag [#allocation6], 1
    %1513 = vsyncpa %s1512, 1
    %1514 = vsyncpa [#allocation9], 1
    %1515 = vsyncpa [#allocation4], 1
    %s1516 = scalar_lea.sflag [#allocation4], 1
    %1517 = vsyncpa %s1516, 1

</llo_original>
